<compile_context>
chip_gen: v5e
topology: v5e:2x2
jax: 0.10.0
libtpu: 0.0.40
codegen_flags: <defaults>
</compile_context>

<pallas_src>
import functools

import jax
import jax.numpy as jnp
from jax.experimental import pallas as pl
from jax.experimental.pallas import tpu as pltpu

# ----------------------------- configuration --------------------------------
POS_DIM = 3
DIR_DIM = 3
NABLAS_DIM = 3
IN_DIM = POS_DIM + DIR_DIM + NABLAS_DIM   # 9 (identity embedders)
D = 4                                     # number of hidden layers
W = 256                                   # hidden width
OUT_DIM = 3                               # rgb
OUT_PAD = 128                             # lane-dense output width
MAX_TILE_N = 2048                         # tunable; sweep 1024/2048/4096
VMEM_LIMIT_BYTES = 32 * 1024 * 1024       # explicit so large tiles fit v5e too


def _device_kind():
    try:
        return jax.devices()[0].device_kind.lower()
    except Exception:
        return ""


def _is_v7x():
    return "v7" in _device_kind()


def _bf16_elementwise_ok():
    # bf16 VPU datapath exists on v6e / v7x; keep f32 elementwise elsewhere.
    kind = _device_kind()
    return ("v6" in kind) or ("v7" in kind)


def _pick_tile(n_rows, max_tile=MAX_TILE_N):
    """Largest pow-2 tile (>=128). Only on v7x (2 TensorCores) do we shrink the
    tile to keep grid length >= 2 so both cores get work; on single-TC chips
    the grid is a serial loop and shrinking is pure loss."""
    min_grid = 2 if _is_v7x() else 1
    t = max_tile
    while t > 128 and n_rows < min_grid * t:
        t //= 2
    return t


# ------------------------------- kernel -------------------------------------
def _radiance_mlp_kernel(xvn_ref,
                         w0_ref, b0_ref,
                         w1_ref, b1_ref,
                         w2_ref, b2_ref,
                         w3_ref, b3_ref,
                         w4_ref, b4_ref,
                         out_ref, *, ew_bf16):
    """Fused 5-layer MLP (4 hidden ReLU layers + sigmoid output) on one row tile.

    xvn_ref : (TILE_N, 9) f32 concatenated [x, v, n]
    w0      : (9, W) f32, w1..w3 : (W, W) bf16, w4 : (W, OUT_PAD) bf16 (zero-padded)
    b*      : (1, fan_out) f32
    out_ref : (TILE_N, OUT_PAD) bf16
    """
    bf16 = jnp.bfloat16
    f32 = jnp.float32

    # Layer 0: single K=9 dot, f32 operands (tiny FLOP share, keeps position
    # dynamic range); bias + ReLU in f32, cast once for the next matmul.
    h = jnp.dot(xvn_ref[...], w0_ref[...], preferred_element_type=f32)
    h = jnp.maximum(h + b0_ref[...], 0.0).astype(bf16)

    # Hidden layers: bf16 matmul operands, f32 accumulation.
    for w_ref, b_ref in ((w1_ref, b1_ref), (w2_ref, b2_ref), (w3_ref, b3_ref)):
        acc = jnp.dot(h, w_ref[...], preferred_element_type=f32)
        if ew_bf16:
            # v6e/v7x: bf16 VPU -> bias/ReLU in bf16, halves intermediate width.
            h = jnp.maximum(acc.astype(bf16) + b_ref[...].astype(bf16), 0)
        else:
            # v5e and older: keep elementwise math in f32.
            h = jnp.maximum(acc + b_ref[...], 0.0).astype(bf16)

    # Output layer: lane-dense (OUT_PAD wide); padded lanes discarded later.
    o = jnp.dot(h, w4_ref[...], preferred_element_type=f32) + b4_ref[...]
    # sigmoid = 1 / (1 + exp(-o)) with exp + approx reciprocal on the EUP slot.
    sig = pl.reciprocal(1.0 + jnp.exp(-o), approx=True)
    out_ref[...] = sig.astype(out_ref.dtype)


# ------------------------------- wrapper -------------------------------------
def _const_spec(shape):
    zeros = tuple(0 for _ in shape)
    return pl.BlockSpec(shape, lambda i, _z=zeros: _z)


@jax.jit
def radiance_net_forward(x, v, n, params):
    """RadianceNet.forward. x, v, n: (..., 3) float32. Returns dict(rgb=(...,3))."""
    lead_shape = x.shape[:-1]
    f32 = jnp.float32
    bf16 = jnp.bfloat16

    # Wrapper-side concat is a trivially cheap mem-bound op (36 B/row) and lets
    # layer 0 be a single dot with one input DMA stream.
    xvn = jnp.concatenate(
        [x.reshape(-1, POS_DIM).astype(f32),
         v.reshape(-1, DIR_DIM).astype(f32),
         n.reshape(-1, NABLAS_DIM).astype(f32)], axis=-1)
    N = xvn.shape[0]

    tile_n = _pick_tile(N)
    n_pad = (-N) % tile_n
    if n_pad:
        xvn = jnp.pad(xvn, ((0, n_pad), (0, 0)))
    Np = N + n_pad

    (w0, b0), (w1, b1), (w2, b2), (w3, b3), (w4, b4) = params

    # Layer-0 weight stays f32; hidden/output weights bf16; output padded to a
    # lane-dense 128 columns so the final store is unmasked.
    w0f = w0.astype(f32)
    w1b = w1.astype(bf16)
    w2b = w2.astype(bf16)
    w3b = w3.astype(bf16)
    w4p = jnp.pad(w4, ((0, 0), (0, OUT_PAD - OUT_DIM))).astype(bf16)
    b0f = b0.astype(f32)
    b1f = b1.astype(f32)
    b2f = b2.astype(f32)
    b3f = b3.astype(f32)
    b4p = jnp.pad(b4, ((0, 0), (0, OUT_PAD - OUT_DIM))).astype(f32)

    grid = (Np // tile_n,)

    flops = 2 * Np * (IN_DIM * W + (D - 1) * W * W + W * OUT_PAD)
    transcendentals = Np * OUT_DIM  # payload-level sigmoid exps
    bytes_accessed = (Np * IN_DIM * 4            # input read
                      + Np * OUT_PAD * 2         # bf16 padded output write
                      + IN_DIM * W * 4           # resident weights, counted once
                      + 2 * ((D - 1) * W * W + W * OUT_PAD)
                      + 4 * (D * W + OUT_PAD))   # biases

    kernel = functools.partial(_radiance_mlp_kernel,
                               ew_bf16=_bf16_elementwise_ok())

    rgb_full = pl.pallas_call(
        kernel,
        out_shape=jax.ShapeDtypeStruct((Np, OUT_PAD), jnp.bfloat16),
        grid=grid,
        in_specs=[
            pl.BlockSpec((tile_n, IN_DIM), lambda i: (i, 0)),
            _const_spec(w0f.shape), _const_spec(b0f.shape),
            _const_spec(w1b.shape), _const_spec(b1f.shape),
            _const_spec(w2b.shape), _const_spec(b2f.shape),
            _const_spec(w3b.shape), _const_spec(b3f.shape),
            _const_spec(w4p.shape), _const_spec(b4p.shape),
        ],
        out_specs=pl.BlockSpec((tile_n, OUT_PAD), lambda i: (i, 0)),
        compiler_params=pltpu.CompilerParams(
            dimension_semantics=("parallel",),
            vmem_limit_bytes=VMEM_LIMIT_BYTES),
        cost_estimate=pl.CostEstimate(
            flops=flops,
            transcendentals=transcendentals,
            bytes_accessed=bytes_accessed),
    )(xvn, w0f, b0f, w1b, b1f, w2b, b2f, w3b, b3f, w4p, b4p)

    rgb = rgb_full[:N, :OUT_DIM].astype(f32).reshape(*lead_shape, OUT_DIM)
    return dict(rgb=rgb)


# --------------------------- parameter creation -------------------------------
def init_params(key):
    """Synthetic init of the 5 linear layers of `blocks`:
       Linear(9->256), 3x Linear(256->256), Linear(256->3). Stored in f32."""
    dims = [(IN_DIM, W)] + [(W, W)] * (D - 1) + [(W, OUT_DIM)]
    params = []
    for fan_in, fan_out in dims:
        key, kw, kb = jax.random.split(key, 3)
        scale = 1.0 / jnp.sqrt(jnp.float32(fan_in))
        w = jax.random.uniform(kw, (fan_in, fan_out), jnp.float32, -scale, scale)
        b = jax.random.uniform(kb, (1, fan_out), jnp.float32, -scale, scale)
        params.append((w, b))
    return params


# -------------------------------- reference -----------------------------------
def reference_forward(x, v, n, params):
    h = jnp.concatenate([x, v, n], axis=-1)
    (w0, b0), (w1, b1), (w2, b2), (w3, b3), (w4, b4) = params
    h = jax.nn.relu(h @ w0 + b0[0])
    h = jax.nn.relu(h @ w1 + b1[0])
    h = jax.nn.relu(h @ w2 + b2[0])
    h = jax.nn.relu(h @ w3 + b3[0])
    return jax.nn.sigmoid(h @ w4 + b4[0])


# TODO(synk): sh_degs (spherical-harmonics output + eval_sh), n_extra_feat and
# appearance-embedding branches of the original module are not exercised by the
# default config and are not implemented here.

# ----------------------------------- main --------------------------------------
if __name__ == "__main__":
    key = jax.random.PRNGKey(0)
    k_par, kx, kv, kn = jax.random.split(key, 4)

    params = init_params(k_par)

    # small "point cloud": leading dims (2, 100) -> 200 rows (tests row padding
    # and the adaptive tile).
    x = jax.random.normal(kx, (2, 100, POS_DIM), jnp.float32)
    v_raw = jax.random.normal(kv, (2, 100, DIR_DIM), jnp.float32)
    v = v_raw / jnp.linalg.norm(v_raw, axis=-1, keepdims=True)
    n_raw = jax.random.normal(kn, (2, 100, NABLAS_DIM), jnp.float32)
    nb = n_raw / jnp.linalg.norm(n_raw, axis=-1, keepdims=True)

    out = radiance_net_forward(x, v, nb, params)
    rgb = jax.block_until_ready(out["rgb"])

    ref = reference_forward(x, v, nb, params)
    assert rgb.shape == (2, 100, 3), rgb.shape
    # bf16 matmul operands + bf16 output store -> loosened tolerance vs the
    # f32 reference.
    assert jnp.allclose(rgb, ref, atol=3e-2, rtol=3e-2), \
        float(jnp.max(jnp.abs(rgb - ref)))

    print("KERNEL_OK")
</pallas_src>

<mosaic_0001>
module attributes {stable_mosaic.version = 11 : i64} {
  func.func @_radiance_mlp_kernel(%arg0: i32, %arg1: memref<128x9xf32, #tpu.memory_space<vmem>>, %arg2: memref<9x256xf32, #tpu.memory_space<vmem>>, %arg3: memref<1x256xf32, #tpu.memory_space<vmem>>, %arg4: memref<256x256xbf16, #tpu.memory_space<vmem>>, %arg5: memref<1x256xf32, #tpu.memory_space<vmem>>, %arg6: memref<256x256xbf16, #tpu.memory_space<vmem>>, %arg7: memref<1x256xf32, #tpu.memory_space<vmem>>, %arg8: memref<256x256xbf16, #tpu.memory_space<vmem>>, %arg9: memref<1x256xf32, #tpu.memory_space<vmem>>, %arg10: memref<256x128xbf16, #tpu.memory_space<vmem>>, %arg11: memref<1x128xf32, #tpu.memory_space<vmem>>, %arg12: memref<128x128xbf16, #tpu.memory_space<vmem>>) attributes {dimension_semantics = [#tpu.dimension_semantics<parallel>], iteration_bounds = array<i64: 2>, scalar_prefetch = 0 : i64, scratch_operands = 0 : i64, tpu.core_type = #tpu.core_type<tc>, window_params = [{transform_indices = @transform_0, window_bounds = array<i64: 128, 9>}, {pipeline_mode = #tpu.pipeline_mode<synchronous>, transform_indices = @transform_1, window_bounds = array<i64: 9, 256>}, {pipeline_mode = #tpu.pipeline_mode<synchronous>, transform_indices = @transform_2, window_bounds = array<i64: 1, 256>}, {pipeline_mode = #tpu.pipeline_mode<synchronous>, transform_indices = @transform_3, window_bounds = array<i64: 256, 256>}, {pipeline_mode = #tpu.pipeline_mode<synchronous>, transform_indices = @transform_4, window_bounds = array<i64: 1, 256>}, {pipeline_mode = #tpu.pipeline_mode<synchronous>, transform_indices = @transform_5, window_bounds = array<i64: 256, 256>}, {pipeline_mode = #tpu.pipeline_mode<synchronous>, transform_indices = @transform_6, window_bounds = array<i64: 1, 256>}, {pipeline_mode = #tpu.pipeline_mode<synchronous>, transform_indices = @transform_7, window_bounds = array<i64: 256, 256>}, {pipeline_mode = #tpu.pipeline_mode<synchronous>, transform_indices = @transform_8, window_bounds = array<i64: 1, 256>}, {pipeline_mode = #tpu.pipeline_mode<synchronous>, transform_indices = @transform_9, window_bounds = array<i64: 256, 128>}, {pipeline_mode = #tpu.pipeline_mode<synchronous>, transform_indices = @transform_10, window_bounds = array<i64: 1, 128>}, {transform_indices = @transform_11, window_bounds = array<i64: 128, 128>}]} {
    %c0 = arith.constant 0 : index
    %c0_0 = arith.constant 0 : index
    %0 = vector.load %arg1[%c0, %c0_0] : memref<128x9xf32, #tpu.memory_space<vmem>>, vector<128x9xf32>
    %c0_1 = arith.constant 0 : index
    %c0_2 = arith.constant 0 : index
    %1 = vector.load %arg2[%c0_1, %c0_2] : memref<9x256xf32, #tpu.memory_space<vmem>>, vector<9x256xf32>
    %cst = arith.constant dense<0.000000e+00> : vector<128x256xf32>
    %2 = tpu.matmul %0, %1, %cst {dimension_numbers = #tpu.dot_dimension_numbers<[1], [0], [0], [1], [0, 0, 1, 1], [], []>} : vector<128x9xf32>, vector<9x256xf32>, vector<128x256xf32> -> vector<128x256xf32>
    %c0_3 = arith.constant 0 : index
    %c0_4 = arith.constant 0 : index
    %3 = vector.load %arg3[%c0_3, %c0_4] : memref<1x256xf32, #tpu.memory_space<vmem>>, vector<1x256xf32>
    %4 = vector.broadcast %3 : vector<1x256xf32> to vector<128x256xf32>
    %5 = arith.addf %2, %4 : vector<128x256xf32>
    %cst_5 = arith.constant 0.000000e+00 : f32
    %6 = vector.broadcast %cst_5 : f32 to vector<128x256xf32>
    %7 = arith.maximumf %5, %6 : vector<128x256xf32>
    %8 = arith.truncf %7 : vector<128x256xf32> to vector<128x256xbf16>
    %c0_6 = arith.constant 0 : index
    %c0_7 = arith.constant 0 : index
    %9 = vector.load %arg4[%c0_6, %c0_7] : memref<256x256xbf16, #tpu.memory_space<vmem>>, vector<256x256xbf16>
    %cst_8 = arith.constant dense<0.000000e+00> : vector<128x256xf32>
    %10 = tpu.matmul %8, %9, %cst_8 {dimension_numbers = #tpu.dot_dimension_numbers<[1], [0], [0], [1], [0, 0, 1, 1], [], []>} : vector<128x256xbf16>, vector<256x256xbf16>, vector<128x256xf32> -> vector<128x256xf32>
    %c0_9 = arith.constant 0 : index
    %c0_10 = arith.constant 0 : index
    %11 = vector.load %arg5[%c0_9, %c0_10] : memref<1x256xf32, #tpu.memory_space<vmem>>, vector<1x256xf32>
    %12 = vector.broadcast %11 : vector<1x256xf32> to vector<128x256xf32>
    %13 = arith.addf %10, %12 : vector<128x256xf32>
    %cst_11 = arith.constant 0.000000e+00 : f32
    %14 = vector.broadcast %cst_11 : f32 to vector<128x256xf32>
    %15 = arith.maximumf %13, %14 : vector<128x256xf32>
    %16 = arith.truncf %15 : vector<128x256xf32> to vector<128x256xbf16>
    %c0_12 = arith.constant 0 : index
    %c0_13 = arith.constant 0 : index
    %17 = vector.load %arg6[%c0_12, %c0_13] : memref<256x256xbf16, #tpu.memory_space<vmem>>, vector<256x256xbf16>
    %cst_14 = arith.constant dense<0.000000e+00> : vector<128x256xf32>
    %18 = tpu.matmul %16, %17, %cst_14 {dimension_numbers = #tpu.dot_dimension_numbers<[1], [0], [0], [1], [0, 0, 1, 1], [], []>} : vector<128x256xbf16>, vector<256x256xbf16>, vector<128x256xf32> -> vector<128x256xf32>
    %c0_15 = arith.constant 0 : index
    %c0_16 = arith.constant 0 : index
    %19 = vector.load %arg7[%c0_15, %c0_16] : memref<1x256xf32, #tpu.memory_space<vmem>>, vector<1x256xf32>
    %20 = vector.broadcast %19 : vector<1x256xf32> to vector<128x256xf32>
    %21 = arith.addf %18, %20 : vector<128x256xf32>
    %cst_17 = arith.constant 0.000000e+00 : f32
    %22 = vector.broadcast %cst_17 : f32 to vector<128x256xf32>
    %23 = arith.maximumf %21, %22 : vector<128x256xf32>
    %24 = arith.truncf %23 : vector<128x256xf32> to vector<128x256xbf16>
    %c0_18 = arith.constant 0 : index
    %c0_19 = arith.constant 0 : index
    %25 = vector.load %arg8[%c0_18, %c0_19] : memref<256x256xbf16, #tpu.memory_space<vmem>>, vector<256x256xbf16>
    %cst_20 = arith.constant dense<0.000000e+00> : vector<128x256xf32>
    %26 = tpu.matmul %24, %25, %cst_20 {dimension_numbers = #tpu.dot_dimension_numbers<[1], [0], [0], [1], [0, 0, 1, 1], [], []>} : vector<128x256xbf16>, vector<256x256xbf16>, vector<128x256xf32> -> vector<128x256xf32>
    %c0_21 = arith.constant 0 : index
    %c0_22 = arith.constant 0 : index
    %27 = vector.load %arg9[%c0_21, %c0_22] : memref<1x256xf32, #tpu.memory_space<vmem>>, vector<1x256xf32>
    %28 = vector.broadcast %27 : vector<1x256xf32> to vector<128x256xf32>
    %29 = arith.addf %26, %28 : vector<128x256xf32>
    %cst_23 = arith.constant 0.000000e+00 : f32
    %30 = vector.broadcast %cst_23 : f32 to vector<128x256xf32>
    %31 = arith.maximumf %29, %30 : vector<128x256xf32>
    %32 = arith.truncf %31 : vector<128x256xf32> to vector<128x256xbf16>
    %c0_24 = arith.constant 0 : index
    %c0_25 = arith.constant 0 : index
    %33 = vector.load %arg10[%c0_24, %c0_25] : memref<256x128xbf16, #tpu.memory_space<vmem>>, vector<256x128xbf16>
    %cst_26 = arith.constant dense<0.000000e+00> : vector<128x128xf32>
    %34 = tpu.matmul %32, %33, %cst_26 {dimension_numbers = #tpu.dot_dimension_numbers<[1], [0], [0], [1], [0, 0, 1, 1], [], []>} : vector<128x256xbf16>, vector<256x128xbf16>, vector<128x128xf32> -> vector<128x128xf32>
    %c0_27 = arith.constant 0 : index
    %c0_28 = arith.constant 0 : index
    %35 = vector.load %arg11[%c0_27, %c0_28] : memref<1x128xf32, #tpu.memory_space<vmem>>, vector<1x128xf32>
    %36 = vector.broadcast %35 : vector<1x128xf32> to vector<128x128xf32>
    %37 = arith.addf %34, %36 : vector<128x128xf32>
    %cst_29 = arith.constant 0.000000e+00 : f32
    %38 = vector.broadcast %cst_29 : f32 to vector<128x128xf32>
    %39 = arith.subf %38, %37 : vector<128x128xf32>
    %40 = math.exp %39 : vector<128x128xf32>
    %cst_30 = arith.constant 1.000000e+00 : f32
    %41 = vector.broadcast %cst_30 : f32 to vector<128x128xf32>
    %42 = arith.addf %41, %40 : vector<128x128xf32>
    %43 = tpu.reciprocal %42 {approx = true} : vector<128x128xf32> -> vector<128x128xf32>
    %44 = arith.truncf %43 : vector<128x128xf32> to vector<128x128xbf16>
    %c0_31 = arith.constant 0 : index
    %c0_32 = arith.constant 0 : index
    %45 = vector.load %arg12[%c0_31, %c0_32] : memref<128x128xbf16, #tpu.memory_space<vmem>>, vector<128x128xbf16>
    tpu.vector_store %arg12[%c0_31, %c0_32], %44 {strides = array<i32>} : memref<128x128xbf16, #tpu.memory_space<vmem>>, vector<128x128xbf16>,
    return
  }
  func.func @transform_0(%arg0: i32) -> (i32, i32) {
    %c0_i32 = arith.constant 0 : i32
    %c0_i32_0 = arith.constant 0 : i32
    return %arg0, %c0_i32 : i32, i32
  }
  func.func @transform_1(%arg0: i32) -> (i32, i32) {
    %c0_i32 = arith.constant 0 : i32
    %c0_i32_0 = arith.constant 0 : i32
    %c0_i32_1 = arith.constant 0 : i32
    return %c0_i32, %c0_i32_0 : i32, i32
  }
  func.func @transform_2(%arg0: i32) -> (i32, i32) {
    %c0_i32 = arith.constant 0 : i32
    %c0_i32_0 = arith.constant 0 : i32
    %c0_i32_1 = arith.constant 0 : i32
    return %c0_i32, %c0_i32_0 : i32, i32
  }
  func.func @transform_3(%arg0: i32) -> (i32, i32) {
    %c0_i32 = arith.constant 0 : i32
    %c0_i32_0 = arith.constant 0 : i32
    %c0_i32_1 = arith.constant 0 : i32
    return %c0_i32, %c0_i32_0 : i32, i32
  }
  func.func @transform_4(%arg0: i32) -> (i32, i32) {
    %c0_i32 = arith.constant 0 : i32
    %c0_i32_0 = arith.constant 0 : i32
    %c0_i32_1 = arith.constant 0 : i32
    return %c0_i32, %c0_i32_0 : i32, i32
  }
  func.func @transform_5(%arg0: i32) -> (i32, i32) {
    %c0_i32 = arith.constant 0 : i32
    %c0_i32_0 = arith.constant 0 : i32
    %c0_i32_1 = arith.constant 0 : i32
    return %c0_i32, %c0_i32_0 : i32, i32
  }
  func.func @transform_6(%arg0: i32) -> (i32, i32) {
    %c0_i32 = arith.constant 0 : i32
    %c0_i32_0 = arith.constant 0 : i32
    %c0_i32_1 = arith.constant 0 : i32
    return %c0_i32, %c0_i32_0 : i32, i32
  }
  func.func @transform_7(%arg0: i32) -> (i32, i32) {
    %c0_i32 = arith.constant 0 : i32
    %c0_i32_0 = arith.constant 0 : i32
    %c0_i32_1 = arith.constant 0 : i32
    return %c0_i32, %c0_i32_0 : i32, i32
  }
  func.func @transform_8(%arg0: i32) -> (i32, i32) {
    %c0_i32 = arith.constant 0 : i32
    %c0_i32_0 = arith.constant 0 : i32
    %c0_i32_1 = arith.constant 0 : i32
    return %c0_i32, %c0_i32_0 : i32, i32
  }
  func.func @transform_9(%arg0: i32) -> (i32, i32) {
    %c0_i32 = arith.constant 0 : i32
    %c0_i32_0 = arith.constant 0 : i32
    %c0_i32_1 = arith.constant 0 : i32
    return %c0_i32, %c0_i32_0 : i32, i32
  }
  func.func @transform_10(%arg0: i32) -> (i32, i32) {
    %c0_i32 = arith.constant 0 : i32
    %c0_i32_0 = arith.constant 0 : i32
    %c0_i32_1 = arith.constant 0 : i32
    return %c0_i32, %c0_i32_0 : i32, i32
  }
  func.func @transform_11(%arg0: i32) -> (i32, i32) {
    %c0_i32 = arith.constant 0 : i32
    %c0_i32_0 = arith.constant 0 : i32
    return %arg0, %c0_i32 : i32, i32
  }
}

</mosaic_0001>

<llo_original>
// kernel: radiance_net_forward.1
$region0: #{radiance_net_forward.1}
  #allocation0 [shape = 'u32[]', space=smem, size = 0x4, offset = 0x4, fixed_abs, tag = 'smem constant byte address 0x4 - core index']
  #allocation1 [shape = 'u32[72,128]{1,0:T(1,128)}', space=vmem, size = 0x9000, scoped, tag = 'internal scratch']
  %s0 = inlined_call_operand.vmem [shape: f32[256,9], index: 0, kind: input, shape index: {}]
  %s1 = inlined_call_operand.vmem [shape: f32[9,256], index: 1, kind: input, shape index: {}]
  %s2 = inlined_call_operand.vmem [shape: f32[1,256], index: 2, kind: input, shape index: {}]
  %s3 = inlined_call_operand.vmem [shape: bf16[256,256], index: 3, kind: input, shape index: {}]
  %s4 = inlined_call_operand.vmem [shape: f32[1,256], index: 4, kind: input, shape index: {}]
  %s5 = inlined_call_operand.vmem [shape: bf16[256,256], index: 5, kind: input, shape index: {}]
  %s6 = inlined_call_operand.vmem [shape: f32[1,256], index: 6, kind: input, shape index: {}]
  %s7 = inlined_call_operand.vmem [shape: bf16[256,256], index: 7, kind: input, shape index: {}]
  %s8 = inlined_call_operand.vmem [shape: f32[1,256], index: 8, kind: input, shape index: {}]
  %s9 = inlined_call_operand.vmem [shape: bf16[256,128], index: 9, kind: input, shape index: {}]
  %s10 = inlined_call_operand.vmem [shape: f32[1,128], index: 10, kind: input, shape index: {}]
  %s11 = inlined_call_operand.vmem [shape: bf16[256,128], index: 11, kind: output, shape index: {}]
  %s12 = sld [smem:[#allocation0]]
  $region77: #{radiance_net_forward.1} parent=0
    _
  %s14 = ssub.s32 1, %s12
  %s15 = scalar_select 0, %s14, %s12
  loop: start=0, step=1, limit=4
  $region2: #{radiance_net_forward.1} parent=0 // loop_pre_header
    _
  $region3: #{radiance_net_forward.1} parent=0 // loop_header
    %s17 = sphi 0, %s21
    %p18 = scmp.ge.s32.totalorder %s17, 4
    %s27 = sphi 0, %s29
    %s30 = sphi 0, %s27
    %s31 = sphi 0, %s30
    %s47 = sphi 0, %s31
    %s51 = sphi 0, %s51
    %s53 = sphi 0, %s51
    %s54 = sphi 0, %s53
    %s68 = sphi 0, %s54
    %s72 = sphi 0, %s72
    %s74 = sphi 0, %s72
    %s75 = sphi 0, %s74
    %s89 = sphi 0, %s75
    %s93 = sphi 0, %s93
    %s95 = sphi 0, %s93
    %s96 = sphi 0, %s95
    %s110 = sphi 0, %s96
    %s114 = sphi 0, %s114
    %s116 = sphi 0, %s114
    %s117 = sphi 0, %s116
    %s131 = sphi 0, %s117
    %s135 = sphi 0, %s135
    %s137 = sphi 0, %s135
    %s138 = sphi 0, %s137
    %s152 = sphi 0, %s138
    %s156 = sphi 0, %s156
    %s158 = sphi 0, %s156
    %s159 = sphi 0, %s158
    %s173 = sphi 0, %s159
    %s177 = sphi 0, %s177
    %s179 = sphi 0, %s177
    %s180 = sphi 0, %s179
    %s194 = sphi 0, %s180
    %s198 = sphi 0, %s198
    %s200 = sphi 0, %s198
    %s201 = sphi 0, %s200
    %s215 = sphi 0, %s201
    %s219 = sphi 0, %s219
    %s221 = sphi 0, %s219
    %s222 = sphi 0, %s221
    %s236 = sphi 0, %s222
    %s240 = sphi 0, %s240
    %s242 = sphi 0, %s240
    %s243 = sphi 0, %s242
    %s257 = sphi 0, %s243
    %s263 = sphi 0, %s265
    %s266 = sphi 0, %s263
    %s267 = sphi 0, %s266
    %s283 = sphi 0, %s267
  $region4: #{radiance_net_forward.1} parent=0 // loop_header_branch
    %20 = sbr.rel (%p18) target = $region8
  $region5: #{radiance_net_forward.1} parent=0 // loop_body
    %s22 = ssub.s32 %s17, 1
    %s23 = ssub.s32 %s17, 2
    %s24 = sadd.s32 %s17, 1
    %s25 = ssub.s32 %s17, %s24
    %p26 = scmp.eq.s32.totalorder %s25, 0
    %s28 = sadd.s32 %s27, 1
    %s29 = scalar_select %p26, %s27, %s28
    %p32 = pneg %p26
    %p33 = scmp.eq.s32.totalorder %s17, 1
    %p34 = por %p32, %p33
    %p35 = scmp.ne.s32.totalorder %s27, %s30
    %p36 = scmp.eq.s32.totalorder %s17, 0
    %p37 = por %p35, %p36
    %p38 = scmp.ne.s32.totalorder %s27, %s30
    %p39 = scmp.eq.s32.totalorder %s22, 1
    %p40 = por %p38, %p39
    %p41 = scmp.ne.s32.totalorder %s30, %s31
    %p42 = scmp.eq.s32.totalorder %s22, 0
    %p43 = por %p41, %p42
    %p44 = scmp.ne.s32.totalorder %s30, %s31
    %p45 = scmp.eq.s32.totalorder %s23, 1
    %p46 = por %p44, %p45
    %p48 = scmp.ne.s32.totalorder %s31, %s47
    %p49 = scmp.eq.s32.totalorder %s23, 0
    %p50 = por %p48, %p49
    %s52 = sadd.s32 %s51, 1
    %p55 = scmp.eq.s32.totalorder %s17, 1
    %p56 = scmp.ne.s32.totalorder %s51, %s53
    %p57 = scmp.eq.s32.totalorder %s17, 0
    %p58 = por %p56, %p57
    %p59 = scmp.ne.s32.totalorder %s51, %s53
    %p60 = scmp.eq.s32.totalorder %s22, 1
    %p61 = por %p59, %p60
    %p62 = scmp.ne.s32.totalorder %s53, %s54
    %p63 = scmp.eq.s32.totalorder %s22, 0
    %p64 = por %p62, %p63
    %p65 = scmp.ne.s32.totalorder %s53, %s54
    %p66 = scmp.eq.s32.totalorder %s23, 1
    %p67 = por %p65, %p66
    %p69 = scmp.ne.s32.totalorder %s54, %s68
    %p70 = scmp.eq.s32.totalorder %s23, 0
    %p71 = por %p69, %p70
    %s73 = sadd.s32 %s72, 1
    %p76 = scmp.eq.s32.totalorder %s17, 1
    %p77 = scmp.ne.s32.totalorder %s72, %s74
    %p78 = scmp.eq.s32.totalorder %s17, 0
    %p79 = por %p77, %p78
    %p80 = scmp.ne.s32.totalorder %s72, %s74
    %p81 = scmp.eq.s32.totalorder %s22, 1
    %p82 = por %p80, %p81
    %p83 = scmp.ne.s32.totalorder %s74, %s75
    %p84 = scmp.eq.s32.totalorder %s22, 0
    %p85 = por %p83, %p84
    %p86 = scmp.ne.s32.totalorder %s74, %s75
    %p87 = scmp.eq.s32.totalorder %s23, 1
    %p88 = por %p86, %p87
    %p90 = scmp.ne.s32.totalorder %s75, %s89
    %p91 = scmp.eq.s32.totalorder %s23, 0
    %p92 = por %p90, %p91
    %s94 = sadd.s32 %s93, 1
    %p97 = scmp.eq.s32.totalorder %s17, 1
    %p98 = scmp.ne.s32.totalorder %s93, %s95
    %p99 = scmp.eq.s32.totalorder %s17, 0
    %p100 = por %p98, %p99
    %p101 = scmp.ne.s32.totalorder %s93, %s95
    %p102 = scmp.eq.s32.totalorder %s22, 1
    %p103 = por %p101, %p102
    %p104 = scmp.ne.s32.totalorder %s95, %s96
    %p105 = scmp.eq.s32.totalorder %s22, 0
    %p106 = por %p104, %p105
    %p107 = scmp.ne.s32.totalorder %s95, %s96
    %p108 = scmp.eq.s32.totalorder %s23, 1
    %p109 = por %p107, %p108
    %p111 = scmp.ne.s32.totalorder %s96, %s110
    %p112 = scmp.eq.s32.totalorder %s23, 0
    %p113 = por %p111, %p112
    %s115 = sadd.s32 %s114, 1
    %p118 = scmp.eq.s32.totalorder %s17, 1
    %p119 = scmp.ne.s32.totalorder %s114, %s116
    %p120 = scmp.eq.s32.totalorder %s17, 0
    %p121 = por %p119, %p120
    %p122 = scmp.ne.s32.totalorder %s114, %s116
    %p123 = scmp.eq.s32.totalorder %s22, 1
    %p124 = por %p122, %p123
    %p125 = scmp.ne.s32.totalorder %s116, %s117
    %p126 = scmp.eq.s32.totalorder %s22, 0
    %p127 = por %p125, %p126
    %p128 = scmp.ne.s32.totalorder %s116, %s117
    %p129 = scmp.eq.s32.totalorder %s23, 1
    %p130 = por %p128, %p129
    %p132 = scmp.ne.s32.totalorder %s117, %s131
    %p133 = scmp.eq.s32.totalorder %s23, 0
    %p134 = por %p132, %p133
    %s136 = sadd.s32 %s135, 1
    %p139 = scmp.eq.s32.totalorder %s17, 1
    %p140 = scmp.ne.s32.totalorder %s135, %s137
    %p141 = scmp.eq.s32.totalorder %s17, 0
    %p142 = por %p140, %p141
    %p143 = scmp.ne.s32.totalorder %s135, %s137
    %p144 = scmp.eq.s32.totalorder %s22, 1
    %p145 = por %p143, %p144
    %p146 = scmp.ne.s32.totalorder %s137, %s138
    %p147 = scmp.eq.s32.totalorder %s22, 0
    %p148 = por %p146, %p147
    %p149 = scmp.ne.s32.totalorder %s137, %s138
    %p150 = scmp.eq.s32.totalorder %s23, 1
    %p151 = por %p149, %p150
    %p153 = scmp.ne.s32.totalorder %s138, %s152
    %p154 = scmp.eq.s32.totalorder %s23, 0
    %p155 = por %p153, %p154
    %s157 = sadd.s32 %s156, 1
    %p160 = scmp.eq.s32.totalorder %s17, 1
    %p161 = scmp.ne.s32.totalorder %s156, %s158
    %p162 = scmp.eq.s32.totalorder %s17, 0
    %p163 = por %p161, %p162
    %p164 = scmp.ne.s32.totalorder %s156, %s158
    %p165 = scmp.eq.s32.totalorder %s22, 1
    %p166 = por %p164, %p165
    %p167 = scmp.ne.s32.totalorder %s158, %s159
    %p168 = scmp.eq.s32.totalorder %s22, 0
    %p169 = por %p167, %p168
    %p170 = scmp.ne.s32.totalorder %s158, %s159
    %p171 = scmp.eq.s32.totalorder %s23, 1
    %p172 = por %p170, %p171
    %p174 = scmp.ne.s32.totalorder %s159, %s173
    %p175 = scmp.eq.s32.totalorder %s23, 0
    %p176 = por %p174, %p175
    %s178 = sadd.s32 %s177, 1
    %p181 = scmp.eq.s32.totalorder %s17, 1
    %p182 = scmp.ne.s32.totalorder %s177, %s179
    %p183 = scmp.eq.s32.totalorder %s17, 0
    %p184 = por %p182, %p183
    %p185 = scmp.ne.s32.totalorder %s177, %s179
    %p186 = scmp.eq.s32.totalorder %s22, 1
    %p187 = por %p185, %p186
    %p188 = scmp.ne.s32.totalorder %s179, %s180
    %p189 = scmp.eq.s32.totalorder %s22, 0
    %p190 = por %p188, %p189
    %p191 = scmp.ne.s32.totalorder %s179, %s180
    %p192 = scmp.eq.s32.totalorder %s23, 1
    %p193 = por %p191, %p192
    %p195 = scmp.ne.s32.totalorder %s180, %s194
    %p196 = scmp.eq.s32.totalorder %s23, 0
    %p197 = por %p195, %p196
    %s199 = sadd.s32 %s198, 1
    %p202 = scmp.eq.s32.totalorder %s17, 1
    %p203 = scmp.ne.s32.totalorder %s198, %s200
    %p204 = scmp.eq.s32.totalorder %s17, 0
    %p205 = por %p203, %p204
    %p206 = scmp.ne.s32.totalorder %s198, %s200
    %p207 = scmp.eq.s32.totalorder %s22, 1
    %p208 = por %p206, %p207
    %p209 = scmp.ne.s32.totalorder %s200, %s201
    %p210 = scmp.eq.s32.totalorder %s22, 0
    %p211 = por %p209, %p210
    %p212 = scmp.ne.s32.totalorder %s200, %s201
    %p213 = scmp.eq.s32.totalorder %s23, 1
    %p214 = por %p212, %p213
    %p216 = scmp.ne.s32.totalorder %s201, %s215
    %p217 = scmp.eq.s32.totalorder %s23, 0
    %p218 = por %p216, %p217
    %s220 = sadd.s32 %s219, 1
    %p223 = scmp.eq.s32.totalorder %s17, 1
    %p224 = scmp.ne.s32.totalorder %s219, %s221
    %p225 = scmp.eq.s32.totalorder %s17, 0
    %p226 = por %p224, %p225
    %p227 = scmp.ne.s32.totalorder %s219, %s221
    %p228 = scmp.eq.s32.totalorder %s22, 1
    %p229 = por %p227, %p228
    %p230 = scmp.ne.s32.totalorder %s221, %s222
    %p231 = scmp.eq.s32.totalorder %s22, 0
    %p232 = por %p230, %p231
    %p233 = scmp.ne.s32.totalorder %s221, %s222
    %p234 = scmp.eq.s32.totalorder %s23, 1
    %p235 = por %p233, %p234
    %p237 = scmp.ne.s32.totalorder %s222, %s236
    %p238 = scmp.eq.s32.totalorder %s23, 0
    %p239 = por %p237, %p238
    %s241 = sadd.s32 %s240, 1
    %p244 = scmp.eq.s32.totalorder %s17, 1
    %p245 = scmp.ne.s32.totalorder %s240, %s242
    %p246 = scmp.eq.s32.totalorder %s17, 0
    %p247 = por %p245, %p246
    %p248 = scmp.ne.s32.totalorder %s240, %s242
    %p249 = scmp.eq.s32.totalorder %s22, 1
    %p250 = por %p248, %p249
    %p251 = scmp.ne.s32.totalorder %s242, %s243
    %p252 = scmp.eq.s32.totalorder %s22, 0
    %p253 = por %p251, %p252
    %p254 = scmp.ne.s32.totalorder %s242, %s243
    %p255 = scmp.eq.s32.totalorder %s23, 1
    %p256 = por %p254, %p255
    %p258 = scmp.ne.s32.totalorder %s243, %s257
    %p259 = scmp.eq.s32.totalorder %s23, 0
    %p260 = por %p258, %p259
    %s261 = ssub.s32 %s17, %s24
    %p262 = scmp.eq.s32.totalorder %s261, 0
    %s264 = sadd.s32 %s263, 1
    %s265 = scalar_select %p262, %s263, %s264
    %p268 = pneg %p262
    %p269 = scmp.eq.s32.totalorder %s17, 1
    %p270 = por %p268, %p269
    %p271 = scmp.ne.s32.totalorder %s263, %s266
    %p272 = scmp.eq.s32.totalorder %s17, 0
    %p273 = por %p271, %p272
    %p274 = scmp.ne.s32.totalorder %s263, %s266
    %p275 = scmp.eq.s32.totalorder %s22, 1
    %p276 = por %p274, %p275
    %p277 = scmp.ne.s32.totalorder %s266, %s267
    %p278 = scmp.eq.s32.totalorder %s22, 0
    %p279 = por %p277, %p278
    %p280 = scmp.ne.s32.totalorder %s266, %s267
    %p281 = scmp.eq.s32.totalorder %s23, 1
    %p282 = por %p280, %p281
    %p284 = scmp.ne.s32.totalorder %s267, %s283
    %p285 = scmp.eq.s32.totalorder %s23, 0
    %p286 = por %p284, %p285
    %p287 = scmp.le.s32.totalorder 1, %s17
    %p288 = scmp.lt.s32.totalorder %s17, 3
    %p289 = pnand %p287, %p288
    %p290 = pneg %p289
    // Predicated region
    $region9: #{radiance_net_forward.1} parent=5 // pred_check
      _
    $region10: #{radiance_net_forward.1} parent=5 // pred_check_branch
      %292 = sbr.rel (%p289) target = $region12
    $region11: #{radiance_net_forward.1} parent=5 // pred_region
      %s293 = ssub.s32 %s17, 1
      // Predicated region
      $region13: #{radiance_net_forward.1} parent=11 // pred_check
        %p294 = pneg %p64
      $region14: #{radiance_net_forward.1} parent=11 // pred_check_branch
        %296 = sbr.rel (%p294) target = $region16
      $region15: #{radiance_net_forward.1} parent=11 // pred_region
        _
      $region16: #{radiance_net_forward.1} parent=11 // pred_fallthru
        _
      // Predicated region
      $region17: #{radiance_net_forward.1} parent=11 // pred_check
        %p297 = pneg %p85
      $region18: #{radiance_net_forward.1} parent=11 // pred_check_branch
        %299 = sbr.rel (%p297) target = $region20
      $region19: #{radiance_net_forward.1} parent=11 // pred_region
        _
      $region20: #{radiance_net_forward.1} parent=11 // pred_fallthru
        _
      // Predicated region
      $region21: #{radiance_net_forward.1} parent=11 // pred_check
        %p300 = pneg %p106
      $region22: #{radiance_net_forward.1} parent=11 // pred_check_branch
        %302 = sbr.rel (%p300) target = $region24
      $region23: #{radiance_net_forward.1} parent=11 // pred_region
        _
      $region24: #{radiance_net_forward.1} parent=11 // pred_fallthru
        _
      // Predicated region
      $region25: #{radiance_net_forward.1} parent=11 // pred_check
        %p303 = pneg %p127
      $region26: #{radiance_net_forward.1} parent=11 // pred_check_branch
        %305 = sbr.rel (%p303) target = $region28
      $region27: #{radiance_net_forward.1} parent=11 // pred_region
        _
      $region28: #{radiance_net_forward.1} parent=11 // pred_fallthru
        _
      // Predicated region
      $region29: #{radiance_net_forward.1} parent=11 // pred_check
        %p306 = pneg %p148
      $region30: #{radiance_net_forward.1} parent=11 // pred_check_branch
        %308 = sbr.rel (%p306) target = $region32
      $region31: #{radiance_net_forward.1} parent=11 // pred_region
        _
      $region32: #{radiance_net_forward.1} parent=11 // pred_fallthru
        _
      // Predicated region
      $region33: #{radiance_net_forward.1} parent=11 // pred_check
        %p309 = pneg %p169
      $region34: #{radiance_net_forward.1} parent=11 // pred_check_branch
        %311 = sbr.rel (%p309) target = $region36
      $region35: #{radiance_net_forward.1} parent=11 // pred_region
        _
      $region36: #{radiance_net_forward.1} parent=11 // pred_fallthru
        _
      // Predicated region
      $region37: #{radiance_net_forward.1} parent=11 // pred_check
        %p312 = pneg %p190
      $region38: #{radiance_net_forward.1} parent=11 // pred_check_branch
        %314 = sbr.rel (%p312) target = $region40
      $region39: #{radiance_net_forward.1} parent=11 // pred_region
        _
      $region40: #{radiance_net_forward.1} parent=11 // pred_fallthru
        _
      // Predicated region
      $region41: #{radiance_net_forward.1} parent=11 // pred_check
        %p315 = pneg %p211
      $region42: #{radiance_net_forward.1} parent=11 // pred_check_branch
        %317 = sbr.rel (%p315) target = $region44
      $region43: #{radiance_net_forward.1} parent=11 // pred_region
        _
      $region44: #{radiance_net_forward.1} parent=11 // pred_fallthru
        _
      // Predicated region
      $region45: #{radiance_net_forward.1} parent=11 // pred_check
        %p318 = pneg %p232
      $region46: #{radiance_net_forward.1} parent=11 // pred_check_branch
        %320 = sbr.rel (%p318) target = $region48
      $region47: #{radiance_net_forward.1} parent=11 // pred_region
        _
      $region48: #{radiance_net_forward.1} parent=11 // pred_fallthru
        _
      // Predicated region
      $region49: #{radiance_net_forward.1} parent=11 // pred_check
        %p321 = pneg %p253
      $region50: #{radiance_net_forward.1} parent=11 // pred_check_branch
        %323 = sbr.rel (%p321) target = $region52
      $region51: #{radiance_net_forward.1} parent=11 // pred_region
        _
      $region52: #{radiance_net_forward.1} parent=11 // pred_fallthru
        _
    $region12: #{radiance_net_forward.1} parent=5 // pred_fallthru
      _
    %p324 = scmp.lt.s32.totalorder %s17, 2
    // Predicated region
    $region53: #{radiance_net_forward.1} parent=5 // pred_check
      %p325 = pneg %p324
    $region54: #{radiance_net_forward.1} parent=5 // pred_check_branch
      %327 = sbr.rel (%p325) target = $region56
    $region55: #{radiance_net_forward.1} parent=5 // pred_region
      // Predicated region
      $region57: #{radiance_net_forward.1} parent=55 // pred_check
        %p328 = pneg %p37
      $region58: #{radiance_net_forward.1} parent=55 // pred_check_branch
        %330 = sbr.rel (%p328) target = $region60
      $region59: #{radiance_net_forward.1} parent=55 // pred_region
        %s331 = smul.u32 16, %s17
        %p332 = scmp.lt.s32.totalorder %s331, 31
        %s333 = scalar_select %p332, %s331, 31
        %s334 = smul.addr %s333, 8
        %s335 = scalar_lea.vmem %s0, %s334
        %s336 = smul.u32 16, %s17
      $region60: #{radiance_net_forward.1} parent=55 // pred_fallthru
        _
    $region56: #{radiance_net_forward.1} parent=5 // pred_fallthru
      _
    %p337 = scmp.le.s32.totalorder 1, %s17
    %p338 = scmp.lt.s32.totalorder %s17, 3
    %p339 = pnand %p337, %p338
    %p340 = pneg %p339
    // Predicated region
    $region61: #{radiance_net_forward.1} parent=5 // pred_check
      _
    $region62: #{radiance_net_forward.1} parent=5 // pred_check_branch
      %342 = sbr.rel (%p339) target = $region64
    $region63: #{radiance_net_forward.1} parent=5 // pred_region
      %s343 = ssub.s32 %s17, 1
      %s344 = smul.u32 16, %s22
      %p345 = scmp.lt.s32.totalorder %s344, 31
      %s346 = scalar_select %p345, %s344, 31
      %s347 = smul.addr %s346, 8
      %s348 = scalar_lea.vmem %s0, %s347
      %p349 = pneg %p43
      %p350 = pneg %p40
      %p351 = pneg %p64
      %p352 = pneg %p61
      %p353 = pneg %p85
      %p354 = pneg %p82
      %p355 = pneg %p106
      %p356 = pneg %p103
      %p357 = pneg %p127
      %p358 = pneg %p124
      %p359 = pneg %p148
      %p360 = pneg %p145
      %p361 = pneg %p169
      %p362 = pneg %p166
      %p363 = pneg %p190
      %p364 = pneg %p187
      %p365 = pneg %p211
      %p366 = pneg %p208
      %p367 = pneg %p232
      %p368 = pneg %p229
      %p369 = pneg %p253
      %p370 = pneg %p250
      %p371 = pneg %p279
      %p372 = pneg %p276
      %s373 = smul.u32 16, %s22
      %p374 = scmp.lt.s32.totalorder %s373, 31
      %s375 = scalar_select %p374, %s373, 31
      %s376 = smul.addr %s375, 4
      %s377 = scalar_lea.vmem %s11, %s376
      %s378 = smul.u32 16, %s22
      %p379 = scmp.lt.s32.totalorder %s378, 31
      %s380 = scalar_select %p379, %s378, 31
      %s381 = smul.addr %s380, 8
      %s382 = scalar_lea.vmem %s0, %s381
      %s383 = smul.u32 16, %s22
      %s384 = smul.u32 16, %s22
      %p385 = scmp.lt.s32.totalorder %s384, 31
      %s386 = scalar_select %p385, %s384, 31
      %s387 = smul.addr %s386, 4
      %s388 = scalar_lea.vmem %s11, %s387
      %s389 = smul.u32 16, %s22
      %v390 = vld [vmem:[%s382] sm:$0xff]
      %v391 = vld [vmem:[%s382 + $0x8] sm:$0xff]
      %v392 = vld [vmem:[%s382 + $0x10] sm:$0xff]
      %v393 = vld [vmem:[%s382 + $0x18] sm:$0xff]
      %v394 = vld [vmem:[%s382 + $0x20] sm:$0xff]
      %v395 = vld [vmem:[%s382 + $0x28] sm:$0xff]
      %v396 = vld [vmem:[%s382 + $0x30] sm:$0xff]
      %v397 = vld [vmem:[%s382 + $0x38] sm:$0xff]
      %v398 = vld [vmem:[%s382 + $0x40] sm:$0xff]
      %v399 = vld [vmem:[%s382 + $0x48] sm:$0xff]
      %v400 = vld [vmem:[%s382 + $0x50] sm:$0xff]
      %v401 = vld [vmem:[%s382 + $0x58] sm:$0xff]
      %v402 = vld [vmem:[%s382 + $0x60] sm:$0xff]
      %v403 = vld [vmem:[%s382 + $0x68] sm:$0xff]
      %v404 = vld [vmem:[%s382 + $0x70] sm:$0xff]
      %v405 = vld [vmem:[%s382 + $0x78] sm:$0xff]
      %v406 = vld [vmem:[%s1] sm:$0xff]
      %v407 = vld [vmem:[%s1 + $0x8] sm:$0xff]
      %v408 = vld [vmem:[%s1 + $0x10] sm:$0x1]
      %v409 = vld [vmem:[%s1 + $0x18] sm:$0x1]
      %v410 = vld [vmem:[%s2] sm:$0x3]
      %v412 = vperm.slane %v410, 0
      %v413 = vperm.slane %v410, 1
      %vm416 = vcmask 72704
      %v418 = vsel %vm416, %v390, 0
      %v421 = vsel %vm416, %v391, 0
      %v424 = vsel %vm416, %v392, 0
      %v427 = vsel %vm416, %v393, 0
      %v430 = vsel %vm416, %v394, 0
      %v433 = vsel %vm416, %v395, 0
      %v436 = vsel %vm416, %v396, 0
      %v439 = vsel %vm416, %v397, 0
      %v442 = vsel %vm416, %v398, 0
      %v445 = vsel %vm416, %v399, 0
      %v448 = vsel %vm416, %v400, 0
      %v451 = vsel %vm416, %v401, 0
      %v454 = vsel %vm416, %v402, 0
      %v457 = vsel %vm416, %v403, 0
      %v460 = vsel %vm416, %v404, 0
      %v463 = vsel %vm416, %v405, 0
      %vm465 = vcmask 1040384
      %v467 = vsel %vm465, %v408, 0
      %v470 = vsel %vm465, %v409, 0
      %472 = vmatpush.msra.mxu0 0.0
      %473 = vmatpush.msra.mxu0 0.0
      %474 = vmatpush.msra.mxu0 0.0
      %475 = vmatpush.msra.mxu0 0.0
      %476 = vmatpush.msra.mxu0 0.0
      %477 = vmatpush.msra.mxu0 0.0
      %478 = vmatpush.msra.mxu0 0.0
      %479 = vmatpush.msra.mxu0 0.0
      %480 = vmatpush.msra.mxu0 0.0
      %481 = vmatpush.msra.mxu0 0.0
      %482 = vmatpush.msra.mxu0 0.0
      %483 = vmatpush.msra.mxu0 0.0
      %484 = vmatpush.msra.mxu0 0.0
      %485 = vmatpush.msra.mxu0 0.0
      %486 = vmatpush.msra.mxu0 %v467
      %487 = vmatpush.msra.mxu0 %v406
      %488 = vmatmul.f32.gmra.mxu0 %v418
      %v489 = vpop.f32.mrf.mxu0
      %v490 = vadd.f32 %v412, %v489
      %491 = vmatmul.f32.gmra.mxu0 %v421
      %v492 = vpop.f32.mrf.mxu0
      %v493 = vadd.f32 %v412, %v492
      %494 = vmatmul.f32.gmra.mxu0 %v424
      %v495 = vpop.f32.mrf.mxu0
      %v496 = vadd.f32 %v412, %v495
      %497 = vmatmul.f32.gmra.mxu0 %v427
      %v498 = vpop.f32.mrf.mxu0
      %v499 = vadd.f32 %v412, %v498
      %500 = vmatmul.f32.gmra.mxu0 %v430
      %v501 = vpop.f32.mrf.mxu0
      %v502 = vadd.f32 %v412, %v501
      %503 = vmatmul.f32.gmra.mxu0 %v433
      %v504 = vpop.f32.mrf.mxu0
      %v505 = vadd.f32 %v412, %v504
      %506 = vmatmul.f32.gmra.mxu0 %v436
      %v507 = vpop.f32.mrf.mxu0
      %v508 = vadd.f32 %v412, %v507
      %509 = vmatmul.f32.gmra.mxu0 %v439
      %v510 = vpop.f32.mrf.mxu0
      %v511 = vadd.f32 %v412, %v510
      %512 = vmatmul.f32.gmra.mxu0 %v442
      %v513 = vpop.f32.mrf.mxu0
      %v514 = vadd.f32 %v412, %v513
      %515 = vmatmul.f32.gmra.mxu0 %v445
      %v516 = vpop.f32.mrf.mxu0
      %v517 = vadd.f32 %v412, %v516
      %518 = vmatmul.f32.gmra.mxu0 %v448
      %v519 = vpop.f32.mrf.mxu0
      %v520 = vadd.f32 %v412, %v519
      %521 = vmatmul.f32.gmra.mxu0 %v451
      %v522 = vpop.f32.mrf.mxu0
      %v523 = vadd.f32 %v412, %v522
      %524 = vmatmul.f32.gmra.mxu0 %v454
      %v525 = vpop.f32.mrf.mxu0
      %v526 = vadd.f32 %v412, %v525
      %527 = vmatmul.f32.gmra.mxu0 %v457
      %v528 = vpop.f32.mrf.mxu0
      %v529 = vadd.f32 %v412, %v528
      %530 = vmatmul.f32.gmra.mxu0 %v460
      %v531 = vpop.f32.mrf.mxu0
      %v532 = vadd.f32 %v412, %v531
      %533 = vmatmul.f32.gmra.mxu0 %v463
      %v534 = vpop.f32.mrf.mxu0
      %v535 = vadd.f32 %v412, %v534
      %536 = vdwg.mxu0
      %537 = vmatpush.msra.mxu0 0.0
      %538 = vmatpush.msra.mxu0 0.0
      %539 = vmatpush.msra.mxu0 0.0
      %540 = vmatpush.msra.mxu0 0.0
      %541 = vmatpush.msra.mxu0 0.0
      %542 = vmatpush.msra.mxu0 0.0
      %543 = vmatpush.msra.mxu0 0.0
      %544 = vmatpush.msra.mxu0 0.0
      %545 = vmatpush.msra.mxu0 0.0
      %546 = vmatpush.msra.mxu0 0.0
      %547 = vmatpush.msra.mxu0 0.0
      %548 = vmatpush.msra.mxu0 0.0
      %549 = vmatpush.msra.mxu0 0.0
      %550 = vmatpush.msra.mxu0 0.0
      %551 = vmatpush.msra.mxu0 %v470
      %552 = vmatpush.msra.mxu0 %v407
      %553 = vmatmul.f32.gmra.mxu0 %v418
      %v554 = vpop.f32.mrf.mxu0
      %v555 = vadd.f32 %v413, %v554
      %556 = vmatmul.f32.gmra.mxu0 %v421
      %v557 = vpop.f32.mrf.mxu0
      %v558 = vadd.f32 %v413, %v557
      %559 = vmatmul.f32.gmra.mxu0 %v424
      %v560 = vpop.f32.mrf.mxu0
      %v561 = vadd.f32 %v413, %v560
      %562 = vmatmul.f32.gmra.mxu0 %v427
      %v563 = vpop.f32.mrf.mxu0
      %v564 = vadd.f32 %v413, %v563
      %565 = vmatmul.f32.gmra.mxu0 %v430
      %v566 = vpop.f32.mrf.mxu0
      %v567 = vadd.f32 %v413, %v566
      %568 = vmatmul.f32.gmra.mxu0 %v433
      %v569 = vpop.f32.mrf.mxu0
      %v570 = vadd.f32 %v413, %v569
      %571 = vmatmul.f32.gmra.mxu0 %v436
      %v572 = vpop.f32.mrf.mxu0
      %v573 = vadd.f32 %v413, %v572
      %574 = vmatmul.f32.gmra.mxu0 %v439
      %v575 = vpop.f32.mrf.mxu0
      %v576 = vadd.f32 %v413, %v575
      %577 = vmatmul.f32.gmra.mxu0 %v442
      %v578 = vpop.f32.mrf.mxu0
      %v579 = vadd.f32 %v413, %v578
      %580 = vmatmul.f32.gmra.mxu0 %v445
      %v581 = vpop.f32.mrf.mxu0
      %v582 = vadd.f32 %v413, %v581
      %583 = vmatmul.f32.gmra.mxu0 %v448
      %v584 = vpop.f32.mrf.mxu0
      %v585 = vadd.f32 %v413, %v584
      %586 = vmatmul.f32.gmra.mxu0 %v451
      %v587 = vpop.f32.mrf.mxu0
      %v588 = vadd.f32 %v413, %v587
      %589 = vmatmul.f32.gmra.mxu0 %v454
      %v590 = vpop.f32.mrf.mxu0
      %v591 = vadd.f32 %v413, %v590
      %592 = vmatmul.f32.gmra.mxu0 %v457
      %v593 = vpop.f32.mrf.mxu0
      %v594 = vadd.f32 %v413, %v593
      %595 = vmatmul.f32.gmra.mxu0 %v460
      %v596 = vpop.f32.mrf.mxu0
      %v597 = vadd.f32 %v413, %v596
      %598 = vmatmul.f32.gmra.mxu0 %v463
      %v599 = vpop.f32.mrf.mxu0
      %v600 = vadd.f32 %v413, %v599
      %601 = vdwg.mxu0
      %v602 = vmax.f32 %v490, 0.0
      %v603 = vmax.f32 %v555, 0.0
      %v604 = vmax.f32 %v493, 0.0
      %v605 = vmax.f32 %v558, 0.0
      %v606 = vmax.f32 %v496, 0.0
      %v607 = vmax.f32 %v561, 0.0
      %v608 = vmax.f32 %v499, 0.0
      %v609 = vmax.f32 %v564, 0.0
      %v610 = vmax.f32 %v502, 0.0
      %v611 = vmax.f32 %v567, 0.0
      %v612 = vmax.f32 %v505, 0.0
      %v613 = vmax.f32 %v570, 0.0
      %v614 = vmax.f32 %v508, 0.0
      %v615 = vmax.f32 %v573, 0.0
      %v616 = vmax.f32 %v511, 0.0
      %v617 = vmax.f32 %v576, 0.0
      %v618 = vmax.f32 %v514, 0.0
      %v619 = vmax.f32 %v579, 0.0
      %v620 = vmax.f32 %v517, 0.0
      %v621 = vmax.f32 %v582, 0.0
      %v622 = vmax.f32 %v520, 0.0
      %v623 = vmax.f32 %v585, 0.0
      %v624 = vmax.f32 %v523, 0.0
      %v625 = vmax.f32 %v588, 0.0
      %v626 = vmax.f32 %v526, 0.0
      %v627 = vmax.f32 %v591, 0.0
      %v628 = vmax.f32 %v529, 0.0
      %v629 = vmax.f32 %v594, 0.0
      %v630 = vmax.f32 %v532, 0.0
      %v631 = vmax.f32 %v597, 0.0
      %v632 = vmax.f32 %v535, 0.0
      %v633 = vmax.f32 %v600, 0.0
      %v634 = vpack.c.bf16 %v604, %v602
      %v635 = vpack.c.bf16 %v605, %v603
      %v636 = vpack.c.bf16 %v608, %v606
      %v637 = vpack.c.bf16 %v609, %v607
      %v638 = vpack.c.bf16 %v612, %v610
      %v639 = vpack.c.bf16 %v613, %v611
      %v640 = vpack.c.bf16 %v616, %v614
      %v641 = vpack.c.bf16 %v617, %v615
      %v642 = vpack.c.bf16 %v620, %v618
      %v643 = vpack.c.bf16 %v621, %v619
      %v644 = vpack.c.bf16 %v624, %v622
      %v645 = vpack.c.bf16 %v625, %v623
      %v646 = vpack.c.bf16 %v628, %v626
      %v647 = vpack.c.bf16 %v629, %v627
      %v648 = vpack.c.bf16 %v632, %v630
      %v649 = vpack.c.bf16 %v633, %v631
      %v650 = vld [vmem:[%s3] sm:$0xff]
      %v651 = vld [vmem:[%s3 + $0x8] sm:$0xff]
      %v652 = vld [vmem:[%s3 + $0x10] sm:$0xff]
      %v653 = vld [vmem:[%s3 + $0x18] sm:$0xff]
      %v654 = vld [vmem:[%s3 + $0x20] sm:$0xff]
      %v655 = vld [vmem:[%s3 + $0x28] sm:$0xff]
      %v656 = vld [vmem:[%s3 + $0x30] sm:$0xff]
      %v657 = vld [vmem:[%s3 + $0x38] sm:$0xff]
      %v658 = vld [vmem:[%s3 + $0x40] sm:$0xff]
      %v659 = vld [vmem:[%s3 + $0x48] sm:$0xff]
      %v660 = vld [vmem:[%s3 + $0x50] sm:$0xff]
      %v661 = vld [vmem:[%s3 + $0x58] sm:$0xff]
      %v662 = vld [vmem:[%s3 + $0x60] sm:$0xff]
      %v663 = vld [vmem:[%s3 + $0x68] sm:$0xff]
      %v664 = vld [vmem:[%s3 + $0x70] sm:$0xff]
      %v665 = vld [vmem:[%s3 + $0x78] sm:$0xff]
      %v666 = vld [vmem:[%s3 + $0x80] sm:$0xff]
      %v667 = vld [vmem:[%s3 + $0x88] sm:$0xff]
      %v668 = vld [vmem:[%s3 + $0x90] sm:$0xff]
      %v669 = vld [vmem:[%s3 + $0x98] sm:$0xff]
      %v670 = vld [vmem:[%s3 + $0xa0] sm:$0xff]
      %v671 = vld [vmem:[%s3 + $0xa8] sm:$0xff]
      %v672 = vld [vmem:[%s3 + $0xb0] sm:$0xff]
      %v673 = vld [vmem:[%s3 + $0xb8] sm:$0xff]
      %v674 = vld [vmem:[%s3 + $0xc0] sm:$0xff]
      %v675 = vld [vmem:[%s3 + $0xc8] sm:$0xff]
      %v676 = vld [vmem:[%s3 + $0xd0] sm:$0xff]
      %v677 = vld [vmem:[%s3 + $0xd8] sm:$0xff]
      %v678 = vld [vmem:[%s3 + $0xe0] sm:$0xff]
      %v679 = vld [vmem:[%s3 + $0xe8] sm:$0xff]
      %v680 = vld [vmem:[%s3 + $0xf0] sm:$0xff]
      %v681 = vld [vmem:[%s3 + $0xf8] sm:$0xff]
      %v682 = vld [vmem:[%s4] sm:$0x3]
      %v684 = vperm.slane %v682, 0
      %v685 = vperm.slane %v682, 1
      %v720 = vunpack.c.l.b16 %v650
      %v721 = vunpack.c.h.b16 %v650
      %v722 = vunpack.c.l.b16 %v651
      %v723 = vunpack.c.h.b16 %v651
      %v724 = vunpack.c.l.b16 %v652
      %v725 = vunpack.c.h.b16 %v652
      %v726 = vunpack.c.l.b16 %v653
      %v727 = vunpack.c.h.b16 %v653
      %v728 = vunpack.c.l.b16 %v654
      %v729 = vunpack.c.h.b16 %v654
      %v730 = vunpack.c.l.b16 %v655
      %v731 = vunpack.c.h.b16 %v655
      %v732 = vunpack.c.l.b16 %v656
      %v733 = vunpack.c.h.b16 %v656
      %v734 = vunpack.c.l.b16 %v657
      %v735 = vunpack.c.h.b16 %v657
      %v736 = vunpack.c.l.b16 %v658
      %v737 = vunpack.c.h.b16 %v658
      %v738 = vunpack.c.l.b16 %v659
      %v739 = vunpack.c.h.b16 %v659
      %v740 = vunpack.c.l.b16 %v660
      %v741 = vunpack.c.h.b16 %v660
      %v742 = vunpack.c.l.b16 %v661
      %v743 = vunpack.c.h.b16 %v661
      %v744 = vunpack.c.l.b16 %v662
      %v745 = vunpack.c.h.b16 %v662
      %v746 = vunpack.c.l.b16 %v663
      %v747 = vunpack.c.h.b16 %v663
      %v748 = vunpack.c.l.b16 %v664
      %v749 = vunpack.c.h.b16 %v664
      %v750 = vunpack.c.l.b16 %v665
      %v751 = vunpack.c.h.b16 %v665
      %v752 = vunpack.c.l.b16 %v666
      %v753 = vunpack.c.h.b16 %v666
      %v754 = vunpack.c.l.b16 %v667
      %v755 = vunpack.c.h.b16 %v667
      %v756 = vunpack.c.l.b16 %v668
      %v757 = vunpack.c.h.b16 %v668
      %v758 = vunpack.c.l.b16 %v669
      %v759 = vunpack.c.h.b16 %v669
      %v760 = vunpack.c.l.b16 %v670
      %v761 = vunpack.c.h.b16 %v670
      %v762 = vunpack.c.l.b16 %v671
      %v763 = vunpack.c.h.b16 %v671
      %v764 = vunpack.c.l.b16 %v672
      %v765 = vunpack.c.h.b16 %v672
      %v766 = vunpack.c.l.b16 %v673
      %v767 = vunpack.c.h.b16 %v673
      %v768 = vunpack.c.l.b16 %v674
      %v769 = vunpack.c.h.b16 %v674
      %v770 = vunpack.c.l.b16 %v675
      %v771 = vunpack.c.h.b16 %v675
      %v772 = vunpack.c.l.b16 %v676
      %v773 = vunpack.c.h.b16 %v676
      %v774 = vunpack.c.l.b16 %v677
      %v775 = vunpack.c.h.b16 %v677
      %v776 = vunpack.c.l.b16 %v678
      %v777 = vunpack.c.h.b16 %v678
      %v778 = vunpack.c.l.b16 %v679
      %v779 = vunpack.c.h.b16 %v679
      %v780 = vunpack.c.l.b16 %v680
      %v781 = vunpack.c.h.b16 %v680
      %v782 = vunpack.c.l.b16 %v681
      %v783 = vunpack.c.h.b16 %v681
      %v784 = vpack.c.b16 %v722, %v720
      %v785 = vpack.c.b16 %v723, %v721
      %v786 = vpack.c.b16 %v726, %v724
      %v787 = vpack.c.b16 %v727, %v725
      %v788 = vpack.c.b16 %v730, %v728
      %v789 = vpack.c.b16 %v731, %v729
      %v790 = vpack.c.b16 %v734, %v732
      %v791 = vpack.c.b16 %v735, %v733
      %v792 = vpack.c.b16 %v738, %v736
      %v793 = vpack.c.b16 %v739, %v737
      %v794 = vpack.c.b16 %v742, %v740
      %v795 = vpack.c.b16 %v743, %v741
      %v796 = vpack.c.b16 %v746, %v744
      %v797 = vpack.c.b16 %v747, %v745
      %v798 = vpack.c.b16 %v750, %v748
      %v799 = vpack.c.b16 %v751, %v749
      %v800 = vpack.c.b16 %v754, %v752
      %v801 = vpack.c.b16 %v755, %v753
      %v802 = vpack.c.b16 %v758, %v756
      %v803 = vpack.c.b16 %v759, %v757
      %v804 = vpack.c.b16 %v762, %v760
      %v805 = vpack.c.b16 %v763, %v761
      %v806 = vpack.c.b16 %v766, %v764
      %v807 = vpack.c.b16 %v767, %v765
      %v808 = vpack.c.b16 %v770, %v768
      %v809 = vpack.c.b16 %v771, %v769
      %v810 = vpack.c.b16 %v774, %v772
      %v811 = vpack.c.b16 %v775, %v773
      %v812 = vpack.c.b16 %v778, %v776
      %v813 = vpack.c.b16 %v779, %v777
      %v814 = vpack.c.b16 %v782, %v780
      %v815 = vpack.c.b16 %v783, %v781
      %848 = vmatpush.bf16.msra.mxu0 %v798
      %849 = vmatpush.bf16.msra.mxu0 %v796
      %850 = vmatpush.bf16.msra.mxu0 %v794
      %851 = vmatpush.bf16.msra.mxu0 %v792
      %852 = vmatpush.bf16.msra.mxu0 %v790
      %853 = vmatpush.bf16.msra.mxu0 %v788
      %854 = vmatpush.bf16.msra.mxu0 %v786
      %855 = vmatpush.bf16.msra.mxu0 %v784
      %856 = vmatmul.bf16.gmra.mxu0 %v634
      %v857 = vpop.f32.mrf.mxu0
      %v858 = vadd.f32 %v684, %v857
      %v859 = vpop.f32.mrf.mxu0
      %v860 = vadd.f32 %v684, %v859
      %861 = vmatmul.bf16.gmra.mxu0 %v636
      %v862 = vpop.f32.mrf.mxu0
      %v863 = vadd.f32 %v684, %v862
      %v864 = vpop.f32.mrf.mxu0
      %v865 = vadd.f32 %v684, %v864
      %866 = vmatmul.bf16.gmra.mxu0 %v638
      %v867 = vpop.f32.mrf.mxu0
      %v868 = vadd.f32 %v684, %v867
      %v869 = vpop.f32.mrf.mxu0
      %v870 = vadd.f32 %v684, %v869
      %871 = vmatmul.bf16.gmra.mxu0 %v640
      %v872 = vpop.f32.mrf.mxu0
      %v873 = vadd.f32 %v684, %v872
      %v874 = vpop.f32.mrf.mxu0
      %v875 = vadd.f32 %v684, %v874
      %876 = vmatmul.bf16.gmra.mxu0 %v642
      %v877 = vpop.f32.mrf.mxu0
      %v878 = vadd.f32 %v684, %v877
      %v879 = vpop.f32.mrf.mxu0
      %v880 = vadd.f32 %v684, %v879
      %881 = vmatmul.bf16.gmra.mxu0 %v644
      %v882 = vpop.f32.mrf.mxu0
      %v883 = vadd.f32 %v684, %v882
      %v884 = vpop.f32.mrf.mxu0
      %v885 = vadd.f32 %v684, %v884
      %886 = vmatmul.bf16.gmra.mxu0 %v646
      %v887 = vpop.f32.mrf.mxu0
      %v888 = vadd.f32 %v684, %v887
      %v889 = vpop.f32.mrf.mxu0
      %v890 = vadd.f32 %v684, %v889
      %891 = vmatmul.bf16.gmra.mxu0 %v648
      %v892 = vpop.f32.mrf.mxu0
      %v893 = vadd.f32 %v684, %v892
      %v894 = vpop.f32.mrf.mxu0
      %v895 = vadd.f32 %v684, %v894
      %896 = vdwg.mxu0
      %897 = vmatpush.bf16.msra.mxu0 %v814
      %898 = vmatpush.bf16.msra.mxu0 %v812
      %899 = vmatpush.bf16.msra.mxu0 %v810
      %900 = vmatpush.bf16.msra.mxu0 %v808
      %901 = vmatpush.bf16.msra.mxu0 %v806
      %902 = vmatpush.bf16.msra.mxu0 %v804
      %903 = vmatpush.bf16.msra.mxu0 %v802
      %904 = vmatpush.bf16.msra.mxu0 %v800
      %905 = vmatmul.bf16.gmra.mxu0 %v635
      %v906 = vpop.f32.mrf.mxu0
      %v907 = vadd.f32 %v858, %v906
      %v908 = vpop.f32.mrf.mxu0
      %v909 = vadd.f32 %v860, %v908
      %910 = vmatmul.bf16.gmra.mxu0 %v637
      %v911 = vpop.f32.mrf.mxu0
      %v912 = vadd.f32 %v863, %v911
      %v913 = vpop.f32.mrf.mxu0
      %v914 = vadd.f32 %v865, %v913
      %915 = vmatmul.bf16.gmra.mxu0 %v639
      %v916 = vpop.f32.mrf.mxu0
      %v917 = vadd.f32 %v868, %v916
      %v918 = vpop.f32.mrf.mxu0
      %v919 = vadd.f32 %v870, %v918
      %920 = vmatmul.bf16.gmra.mxu0 %v641
      %v921 = vpop.f32.mrf.mxu0
      %v922 = vadd.f32 %v873, %v921
      %v923 = vpop.f32.mrf.mxu0
      %v924 = vadd.f32 %v875, %v923
      %925 = vmatmul.bf16.gmra.mxu0 %v643
      %v926 = vpop.f32.mrf.mxu0
      %v927 = vadd.f32 %v878, %v926
      %v928 = vpop.f32.mrf.mxu0
      %v929 = vadd.f32 %v880, %v928
      %930 = vmatmul.bf16.gmra.mxu0 %v645
      %v931 = vpop.f32.mrf.mxu0
      %v932 = vadd.f32 %v883, %v931
      %v933 = vpop.f32.mrf.mxu0
      %v934 = vadd.f32 %v885, %v933
      %935 = vmatmul.bf16.gmra.mxu0 %v647
      %v936 = vpop.f32.mrf.mxu0
      %v937 = vadd.f32 %v888, %v936
      %v938 = vpop.f32.mrf.mxu0
      %v939 = vadd.f32 %v890, %v938
      %940 = vmatmul.bf16.gmra.mxu0 %v649
      %v941 = vpop.f32.mrf.mxu0
      %v942 = vadd.f32 %v893, %v941
      %v943 = vpop.f32.mrf.mxu0
      %v944 = vadd.f32 %v895, %v943
      %945 = vdwg.mxu0
      %946 = vmatpush.bf16.msra.mxu0 %v799
      %947 = vmatpush.bf16.msra.mxu0 %v797
      %948 = vmatpush.bf16.msra.mxu0 %v795
      %949 = vmatpush.bf16.msra.mxu0 %v793
      %950 = vmatpush.bf16.msra.mxu0 %v791
      %951 = vmatpush.bf16.msra.mxu0 %v789
      %952 = vmatpush.bf16.msra.mxu0 %v787
      %953 = vmatpush.bf16.msra.mxu0 %v785
      %954 = vmatmul.bf16.gmra.mxu0 %v634
      %v955 = vpop.f32.mrf.mxu0
      %v956 = vadd.f32 %v685, %v955
      %v957 = vpop.f32.mrf.mxu0
      %v958 = vadd.f32 %v685, %v957
      %959 = vmatmul.bf16.gmra.mxu0 %v636
      %v960 = vpop.f32.mrf.mxu0
      %v961 = vadd.f32 %v685, %v960
      %v962 = vpop.f32.mrf.mxu0
      %v963 = vadd.f32 %v685, %v962
      %964 = vmatmul.bf16.gmra.mxu0 %v638
      %v965 = vpop.f32.mrf.mxu0
      %v966 = vadd.f32 %v685, %v965
      %v967 = vpop.f32.mrf.mxu0
      %v968 = vadd.f32 %v685, %v967
      %969 = vmatmul.bf16.gmra.mxu0 %v640
      %v970 = vpop.f32.mrf.mxu0
      %v971 = vadd.f32 %v685, %v970
      %v972 = vpop.f32.mrf.mxu0
      %v973 = vadd.f32 %v685, %v972
      %974 = vmatmul.bf16.gmra.mxu0 %v642
      %v975 = vpop.f32.mrf.mxu0
      %v976 = vadd.f32 %v685, %v975
      %v977 = vpop.f32.mrf.mxu0
      %v978 = vadd.f32 %v685, %v977
      %979 = vmatmul.bf16.gmra.mxu0 %v644
      %v980 = vpop.f32.mrf.mxu0
      %v981 = vadd.f32 %v685, %v980
      %v982 = vpop.f32.mrf.mxu0
      %v983 = vadd.f32 %v685, %v982
      %984 = vmatmul.bf16.gmra.mxu0 %v646
      %v985 = vpop.f32.mrf.mxu0
      %v986 = vadd.f32 %v685, %v985
      %v987 = vpop.f32.mrf.mxu0
      %v988 = vadd.f32 %v685, %v987
      %989 = vmatmul.bf16.gmra.mxu0 %v648
      %v990 = vpop.f32.mrf.mxu0
      %v991 = vadd.f32 %v685, %v990
      %v992 = vpop.f32.mrf.mxu0
      %v993 = vadd.f32 %v685, %v992
      %994 = vdwg.mxu0
      %995 = vmatpush.bf16.msra.mxu0 %v815
      %996 = vmatpush.bf16.msra.mxu0 %v813
      %997 = vmatpush.bf16.msra.mxu0 %v811
      %998 = vmatpush.bf16.msra.mxu0 %v809
      %999 = vmatpush.bf16.msra.mxu0 %v807
      %1000 = vmatpush.bf16.msra.mxu0 %v805
      %1001 = vmatpush.bf16.msra.mxu0 %v803
      %1002 = vmatpush.bf16.msra.mxu0 %v801
      %1003 = vmatmul.bf16.gmra.mxu0 %v635
      %v1004 = vpop.f32.mrf.mxu0
      %v1005 = vadd.f32 %v956, %v1004
      %v1006 = vpop.f32.mrf.mxu0
      %v1007 = vadd.f32 %v958, %v1006
      %1008 = vmatmul.bf16.gmra.mxu0 %v637
      %v1009 = vpop.f32.mrf.mxu0
      %v1010 = vadd.f32 %v961, %v1009
      %v1011 = vpop.f32.mrf.mxu0
      %v1012 = vadd.f32 %v963, %v1011
      %1013 = vmatmul.bf16.gmra.mxu0 %v639
      %v1014 = vpop.f32.mrf.mxu0
      %v1015 = vadd.f32 %v966, %v1014
      %v1016 = vpop.f32.mrf.mxu0
      %v1017 = vadd.f32 %v968, %v1016
      %1018 = vmatmul.bf16.gmra.mxu0 %v641
      %v1019 = vpop.f32.mrf.mxu0
      %v1020 = vadd.f32 %v971, %v1019
      %v1021 = vpop.f32.mrf.mxu0
      %v1022 = vadd.f32 %v973, %v1021
      %1023 = vmatmul.bf16.gmra.mxu0 %v643
      %v1024 = vpop.f32.mrf.mxu0
      %v1025 = vadd.f32 %v976, %v1024
      %v1026 = vpop.f32.mrf.mxu0
      %v1027 = vadd.f32 %v978, %v1026
      %1028 = vmatmul.bf16.gmra.mxu0 %v645
      %v1029 = vpop.f32.mrf.mxu0
      %v1030 = vadd.f32 %v981, %v1029
      %v1031 = vpop.f32.mrf.mxu0
      %v1032 = vadd.f32 %v983, %v1031
      %1033 = vmatmul.bf16.gmra.mxu0 %v647
      %v1034 = vpop.f32.mrf.mxu0
      %v1035 = vadd.f32 %v986, %v1034
      %v1036 = vpop.f32.mrf.mxu0
      %v1037 = vadd.f32 %v988, %v1036
      %1038 = vmatmul.bf16.gmra.mxu0 %v649
      %v1039 = vpop.f32.mrf.mxu0
      %v1040 = vadd.f32 %v991, %v1039
      %v1041 = vpop.f32.mrf.mxu0
      %v1042 = vadd.f32 %v993, %v1041
      %1043 = vdwg.mxu0
      %v1044 = vmax.f32 %v907, 0.0
      %v1045 = vmax.f32 %v1005, 0.0
      %v1046 = vmax.f32 %v909, 0.0
      %v1047 = vmax.f32 %v1007, 0.0
      %v1048 = vmax.f32 %v912, 0.0
      %v1049 = vmax.f32 %v1010, 0.0
      %v1050 = vmax.f32 %v914, 0.0
      %v1051 = vmax.f32 %v1012, 0.0
      %v1052 = vmax.f32 %v917, 0.0
      %v1053 = vmax.f32 %v1015, 0.0
      %v1054 = vmax.f32 %v919, 0.0
      %v1055 = vmax.f32 %v1017, 0.0
      %v1056 = vmax.f32 %v922, 0.0
      %v1057 = vmax.f32 %v1020, 0.0
      %v1058 = vmax.f32 %v924, 0.0
      %v1059 = vmax.f32 %v1022, 0.0
      %v1060 = vmax.f32 %v927, 0.0
      %v1061 = vmax.f32 %v1025, 0.0
      %v1062 = vmax.f32 %v929, 0.0
      %v1063 = vmax.f32 %v1027, 0.0
      %v1064 = vmax.f32 %v932, 0.0
      %v1065 = vmax.f32 %v1030, 0.0
      %v1066 = vmax.f32 %v934, 0.0
      %v1067 = vmax.f32 %v1032, 0.0
      %v1068 = vmax.f32 %v937, 0.0
      %v1069 = vmax.f32 %v1035, 0.0
      %v1070 = vmax.f32 %v939, 0.0
      %v1071 = vmax.f32 %v1037, 0.0
      %v1072 = vmax.f32 %v942, 0.0
      %v1073 = vmax.f32 %v1040, 0.0
      %v1074 = vmax.f32 %v944, 0.0
      %v1075 = vmax.f32 %v1042, 0.0
      %v1076 = vpack.c.bf16 %v1046, %v1044
      %v1077 = vpack.c.bf16 %v1047, %v1045
      %v1078 = vpack.c.bf16 %v1050, %v1048
      %v1079 = vpack.c.bf16 %v1051, %v1049
      %v1080 = vpack.c.bf16 %v1054, %v1052
      %v1081 = vpack.c.bf16 %v1055, %v1053
      %v1082 = vpack.c.bf16 %v1058, %v1056
      %v1083 = vpack.c.bf16 %v1059, %v1057
      %v1084 = vpack.c.bf16 %v1062, %v1060
      %v1085 = vpack.c.bf16 %v1063, %v1061
      %v1086 = vpack.c.bf16 %v1066, %v1064
      %v1087 = vpack.c.bf16 %v1067, %v1065
      %v1088 = vpack.c.bf16 %v1070, %v1068
      %v1089 = vpack.c.bf16 %v1071, %v1069
      %v1090 = vpack.c.bf16 %v1074, %v1072
      %v1091 = vpack.c.bf16 %v1075, %v1073
      %v1092 = vld [vmem:[%s5] sm:$0xff]
      %v1093 = vld [vmem:[%s5 + $0x8] sm:$0xff]
      %v1094 = vld [vmem:[%s5 + $0x10] sm:$0xff]
      %v1095 = vld [vmem:[%s5 + $0x18] sm:$0xff]
      %v1096 = vld [vmem:[%s5 + $0x20] sm:$0xff]
      %v1097 = vld [vmem:[%s5 + $0x28] sm:$0xff]
      %v1098 = vld [vmem:[%s5 + $0x30] sm:$0xff]
      %v1099 = vld [vmem:[%s5 + $0x38] sm:$0xff]
      %v1100 = vld [vmem:[%s5 + $0x40] sm:$0xff]
      %v1101 = vld [vmem:[%s5 + $0x48] sm:$0xff]
      %v1102 = vld [vmem:[%s5 + $0x50] sm:$0xff]
      %v1103 = vld [vmem:[%s5 + $0x58] sm:$0xff]
      %v1104 = vld [vmem:[%s5 + $0x60] sm:$0xff]
      %v1105 = vld [vmem:[%s5 + $0x68] sm:$0xff]
      %v1106 = vld [vmem:[%s5 + $0x70] sm:$0xff]
      %v1107 = vld [vmem:[%s5 + $0x78] sm:$0xff]
      %v1108 = vld [vmem:[%s5 + $0x80] sm:$0xff]
      %v1109 = vld [vmem:[%s5 + $0x88] sm:$0xff]
      %v1110 = vld [vmem:[%s5 + $0x90] sm:$0xff]
      %v1111 = vld [vmem:[%s5 + $0x98] sm:$0xff]
      %v1112 = vld [vmem:[%s5 + $0xa0] sm:$0xff]
      %v1113 = vld [vmem:[%s5 + $0xa8] sm:$0xff]
      %v1114 = vld [vmem:[%s5 + $0xb0] sm:$0xff]
      %v1115 = vld [vmem:[%s5 + $0xb8] sm:$0xff]
      %v1116 = vld [vmem:[%s5 + $0xc0] sm:$0xff]
      %v1117 = vld [vmem:[%s5 + $0xc8] sm:$0xff]
      %v1118 = vld [vmem:[%s5 + $0xd0] sm:$0xff]
      %v1119 = vld [vmem:[%s5 + $0xd8] sm:$0xff]
      %v1120 = vld [vmem:[%s5 + $0xe0] sm:$0xff]
      %v1121 = vld [vmem:[%s5 + $0xe8] sm:$0xff]
      %v1122 = vld [vmem:[%s5 + $0xf0] sm:$0xff]
      %v1123 = vld [vmem:[%s5 + $0xf8] sm:$0xff]
      %v1124 = vld [vmem:[%s6] sm:$0x3]
      %v1126 = vperm.slane %v1124, 0
      %v1127 = vperm.slane %v1124, 1
      %v1162 = vunpack.c.l.b16 %v1092
      %v1163 = vunpack.c.h.b16 %v1092
      %v1164 = vunpack.c.l.b16 %v1093
      %v1165 = vunpack.c.h.b16 %v1093
      %v1166 = vunpack.c.l.b16 %v1094
      %v1167 = vunpack.c.h.b16 %v1094
      %v1168 = vunpack.c.l.b16 %v1095
      %v1169 = vunpack.c.h.b16 %v1095
      %v1170 = vunpack.c.l.b16 %v1096
      %v1171 = vunpack.c.h.b16 %v1096
      %v1172 = vunpack.c.l.b16 %v1097
      %v1173 = vunpack.c.h.b16 %v1097
      %v1174 = vunpack.c.l.b16 %v1098
      %v1175 = vunpack.c.h.b16 %v1098
      %v1176 = vunpack.c.l.b16 %v1099
      %v1177 = vunpack.c.h.b16 %v1099
      %v1178 = vunpack.c.l.b16 %v1100
      %v1179 = vunpack.c.h.b16 %v1100
      %v1180 = vunpack.c.l.b16 %v1101
      %v1181 = vunpack.c.h.b16 %v1101
      %v1182 = vunpack.c.l.b16 %v1102
      %v1183 = vunpack.c.h.b16 %v1102
      %v1184 = vunpack.c.l.b16 %v1103
      %v1185 = vunpack.c.h.b16 %v1103
      %v1186 = vunpack.c.l.b16 %v1104
      %v1187 = vunpack.c.h.b16 %v1104
      %v1188 = vunpack.c.l.b16 %v1105
      %v1189 = vunpack.c.h.b16 %v1105
      %v1190 = vunpack.c.l.b16 %v1106
      %v1191 = vunpack.c.h.b16 %v1106
      %v1192 = vunpack.c.l.b16 %v1107
      %v1193 = vunpack.c.h.b16 %v1107
      %v1194 = vunpack.c.l.b16 %v1108
      %v1195 = vunpack.c.h.b16 %v1108
      %v1196 = vunpack.c.l.b16 %v1109
      %v1197 = vunpack.c.h.b16 %v1109
      %v1198 = vunpack.c.l.b16 %v1110
      %v1199 = vunpack.c.h.b16 %v1110
      %v1200 = vunpack.c.l.b16 %v1111
      %v1201 = vunpack.c.h.b16 %v1111
      %v1202 = vunpack.c.l.b16 %v1112
      %v1203 = vunpack.c.h.b16 %v1112
      %v1204 = vunpack.c.l.b16 %v1113
      %v1205 = vunpack.c.h.b16 %v1113
      %v1206 = vunpack.c.l.b16 %v1114
      %v1207 = vunpack.c.h.b16 %v1114
      %v1208 = vunpack.c.l.b16 %v1115
      %v1209 = vunpack.c.h.b16 %v1115
      %v1210 = vunpack.c.l.b16 %v1116
      %v1211 = vunpack.c.h.b16 %v1116
      %v1212 = vunpack.c.l.b16 %v1117
      %v1213 = vunpack.c.h.b16 %v1117
      %v1214 = vunpack.c.l.b16 %v1118
      %v1215 = vunpack.c.h.b16 %v1118
      %v1216 = vunpack.c.l.b16 %v1119
      %v1217 = vunpack.c.h.b16 %v1119
      %v1218 = vunpack.c.l.b16 %v1120
      %v1219 = vunpack.c.h.b16 %v1120
      %v1220 = vunpack.c.l.b16 %v1121
      %v1221 = vunpack.c.h.b16 %v1121
      %v1222 = vunpack.c.l.b16 %v1122
      %v1223 = vunpack.c.h.b16 %v1122
      %v1224 = vunpack.c.l.b16 %v1123
      %v1225 = vunpack.c.h.b16 %v1123
      %v1226 = vpack.c.b16 %v1164, %v1162
      %v1227 = vpack.c.b16 %v1165, %v1163
      %v1228 = vpack.c.b16 %v1168, %v1166
      %v1229 = vpack.c.b16 %v1169, %v1167
      %v1230 = vpack.c.b16 %v1172, %v1170
      %v1231 = vpack.c.b16 %v1173, %v1171
      %v1232 = vpack.c.b16 %v1176, %v1174
      %v1233 = vpack.c.b16 %v1177, %v1175
      %v1234 = vpack.c.b16 %v1180, %v1178
      %v1235 = vpack.c.b16 %v1181, %v1179
      %v1236 = vpack.c.b16 %v1184, %v1182
      %v1237 = vpack.c.b16 %v1185, %v1183
      %v1238 = vpack.c.b16 %v1188, %v1186
      %v1239 = vpack.c.b16 %v1189, %v1187
      %v1240 = vpack.c.b16 %v1192, %v1190
      %v1241 = vpack.c.b16 %v1193, %v1191
      %v1242 = vpack.c.b16 %v1196, %v1194
      %v1243 = vpack.c.b16 %v1197, %v1195
      %v1244 = vpack.c.b16 %v1200, %v1198
      %v1245 = vpack.c.b16 %v1201, %v1199
      %v1246 = vpack.c.b16 %v1204, %v1202
      %v1247 = vpack.c.b16 %v1205, %v1203
      %v1248 = vpack.c.b16 %v1208, %v1206
      %v1249 = vpack.c.b16 %v1209, %v1207
      %v1250 = vpack.c.b16 %v1212, %v1210
      %v1251 = vpack.c.b16 %v1213, %v1211
      %v1252 = vpack.c.b16 %v1216, %v1214
      %v1253 = vpack.c.b16 %v1217, %v1215
      %v1254 = vpack.c.b16 %v1220, %v1218
      %v1255 = vpack.c.b16 %v1221, %v1219
      %v1256 = vpack.c.b16 %v1224, %v1222
      %v1257 = vpack.c.b16 %v1225, %v1223
      %1290 = vmatpush.bf16.msra.mxu0 %v1240
      %1291 = vmatpush.bf16.msra.mxu0 %v1238
      %1292 = vmatpush.bf16.msra.mxu0 %v1236
      %1293 = vmatpush.bf16.msra.mxu0 %v1234
      %1294 = vmatpush.bf16.msra.mxu0 %v1232
      %1295 = vmatpush.bf16.msra.mxu0 %v1230
      %1296 = vmatpush.bf16.msra.mxu0 %v1228
      %1297 = vmatpush.bf16.msra.mxu0 %v1226
      %1298 = vmatmul.bf16.gmra.mxu0 %v1076
      %v1299 = vpop.f32.mrf.mxu0
      %v1300 = vadd.f32 %v1126, %v1299
      %v1301 = vpop.f32.mrf.mxu0
      %v1302 = vadd.f32 %v1126, %v1301
      %1303 = vmatmul.bf16.gmra.mxu0 %v1078
      %v1304 = vpop.f32.mrf.mxu0
      %v1305 = vadd.f32 %v1126, %v1304
      %v1306 = vpop.f32.mrf.mxu0
      %v1307 = vadd.f32 %v1126, %v1306
      %1308 = vmatmul.bf16.gmra.mxu0 %v1080
      %v1309 = vpop.f32.mrf.mxu0
      %v1310 = vadd.f32 %v1126, %v1309
      %v1311 = vpop.f32.mrf.mxu0
      %v1312 = vadd.f32 %v1126, %v1311
      %1313 = vmatmul.bf16.gmra.mxu0 %v1082
      %v1314 = vpop.f32.mrf.mxu0
      %v1315 = vadd.f32 %v1126, %v1314
      %v1316 = vpop.f32.mrf.mxu0
      %v1317 = vadd.f32 %v1126, %v1316
      %1318 = vmatmul.bf16.gmra.mxu0 %v1084
      %v1319 = vpop.f32.mrf.mxu0
      %v1320 = vadd.f32 %v1126, %v1319
      %v1321 = vpop.f32.mrf.mxu0
      %v1322 = vadd.f32 %v1126, %v1321
      %1323 = vmatmul.bf16.gmra.mxu0 %v1086
      %v1324 = vpop.f32.mrf.mxu0
      %v1325 = vadd.f32 %v1126, %v1324
      %v1326 = vpop.f32.mrf.mxu0
      %v1327 = vadd.f32 %v1126, %v1326
      %1328 = vmatmul.bf16.gmra.mxu0 %v1088
      %v1329 = vpop.f32.mrf.mxu0
      %v1330 = vadd.f32 %v1126, %v1329
      %v1331 = vpop.f32.mrf.mxu0
      %v1332 = vadd.f32 %v1126, %v1331
      %1333 = vmatmul.bf16.gmra.mxu0 %v1090
      %v1334 = vpop.f32.mrf.mxu0
      %v1335 = vadd.f32 %v1126, %v1334
      %v1336 = vpop.f32.mrf.mxu0
      %v1337 = vadd.f32 %v1126, %v1336
      %1338 = vdwg.mxu0
      %1339 = vmatpush.bf16.msra.mxu0 %v1256
      %1340 = vmatpush.bf16.msra.mxu0 %v1254
      %1341 = vmatpush.bf16.msra.mxu0 %v1252
      %1342 = vmatpush.bf16.msra.mxu0 %v1250
      %1343 = vmatpush.bf16.msra.mxu0 %v1248
      %1344 = vmatpush.bf16.msra.mxu0 %v1246
      %1345 = vmatpush.bf16.msra.mxu0 %v1244
      %1346 = vmatpush.bf16.msra.mxu0 %v1242
      %1347 = vmatmul.bf16.gmra.mxu0 %v1077
      %v1348 = vpop.f32.mrf.mxu0
      %v1349 = vadd.f32 %v1300, %v1348
      %v1350 = vpop.f32.mrf.mxu0
      %v1351 = vadd.f32 %v1302, %v1350
      %1352 = vmatmul.bf16.gmra.mxu0 %v1079
      %v1353 = vpop.f32.mrf.mxu0
      %v1354 = vadd.f32 %v1305, %v1353
      %v1355 = vpop.f32.mrf.mxu0
      %v1356 = vadd.f32 %v1307, %v1355
      %1357 = vmatmul.bf16.gmra.mxu0 %v1081
      %v1358 = vpop.f32.mrf.mxu0
      %v1359 = vadd.f32 %v1310, %v1358
      %v1360 = vpop.f32.mrf.mxu0
      %v1361 = vadd.f32 %v1312, %v1360
      %1362 = vmatmul.bf16.gmra.mxu0 %v1083
      %v1363 = vpop.f32.mrf.mxu0
      %v1364 = vadd.f32 %v1315, %v1363
      %v1365 = vpop.f32.mrf.mxu0
      %v1366 = vadd.f32 %v1317, %v1365
      %1367 = vmatmul.bf16.gmra.mxu0 %v1085
      %v1368 = vpop.f32.mrf.mxu0
      %v1369 = vadd.f32 %v1320, %v1368
      %v1370 = vpop.f32.mrf.mxu0
      %v1371 = vadd.f32 %v1322, %v1370
      %1372 = vmatmul.bf16.gmra.mxu0 %v1087
      %v1373 = vpop.f32.mrf.mxu0
      %v1374 = vadd.f32 %v1325, %v1373
      %v1375 = vpop.f32.mrf.mxu0
      %v1376 = vadd.f32 %v1327, %v1375
      %1377 = vmatmul.bf16.gmra.mxu0 %v1089
      %v1378 = vpop.f32.mrf.mxu0
      %v1379 = vadd.f32 %v1330, %v1378
      %v1380 = vpop.f32.mrf.mxu0
      %v1381 = vadd.f32 %v1332, %v1380
      %1382 = vmatmul.bf16.gmra.mxu0 %v1091
      %v1383 = vpop.f32.mrf.mxu0
      %v1384 = vadd.f32 %v1335, %v1383
      %v1385 = vpop.f32.mrf.mxu0
      %v1386 = vadd.f32 %v1337, %v1385
      %1387 = vdwg.mxu0
      %1388 = vmatpush.bf16.msra.mxu0 %v1241
      %1389 = vmatpush.bf16.msra.mxu0 %v1239
      %1390 = vmatpush.bf16.msra.mxu0 %v1237
      %1391 = vmatpush.bf16.msra.mxu0 %v1235
      %1392 = vmatpush.bf16.msra.mxu0 %v1233
      %1393 = vmatpush.bf16.msra.mxu0 %v1231
      %1394 = vmatpush.bf16.msra.mxu0 %v1229
      %1395 = vmatpush.bf16.msra.mxu0 %v1227
      %1396 = vmatmul.bf16.gmra.mxu0 %v1076
      %v1397 = vpop.f32.mrf.mxu0
      %v1398 = vadd.f32 %v1127, %v1397
      %v1399 = vpop.f32.mrf.mxu0
      %v1400 = vadd.f32 %v1127, %v1399
      %1401 = vmatmul.bf16.gmra.mxu0 %v1078
      %v1402 = vpop.f32.mrf.mxu0
      %v1403 = vadd.f32 %v1127, %v1402
      %v1404 = vpop.f32.mrf.mxu0
      %v1405 = vadd.f32 %v1127, %v1404
      %1406 = vmatmul.bf16.gmra.mxu0 %v1080
      %v1407 = vpop.f32.mrf.mxu0
      %v1408 = vadd.f32 %v1127, %v1407
      %v1409 = vpop.f32.mrf.mxu0
      %v1410 = vadd.f32 %v1127, %v1409
      %1411 = vmatmul.bf16.gmra.mxu0 %v1082
      %v1412 = vpop.f32.mrf.mxu0
      %v1413 = vadd.f32 %v1127, %v1412
      %v1414 = vpop.f32.mrf.mxu0
      %v1415 = vadd.f32 %v1127, %v1414
      %1416 = vmatmul.bf16.gmra.mxu0 %v1084
      %v1417 = vpop.f32.mrf.mxu0
      %v1418 = vadd.f32 %v1127, %v1417
      %v1419 = vpop.f32.mrf.mxu0
      %v1420 = vadd.f32 %v1127, %v1419
      %1421 = vmatmul.bf16.gmra.mxu0 %v1086
      %v1422 = vpop.f32.mrf.mxu0
      %v1423 = vadd.f32 %v1127, %v1422
      %v1424 = vpop.f32.mrf.mxu0
      %v1425 = vadd.f32 %v1127, %v1424
      %1426 = vmatmul.bf16.gmra.mxu0 %v1088
      %v1427 = vpop.f32.mrf.mxu0
      %v1428 = vadd.f32 %v1127, %v1427
      %v1429 = vpop.f32.mrf.mxu0
      %v1430 = vadd.f32 %v1127, %v1429
      %1431 = vmatmul.bf16.gmra.mxu0 %v1090
      %v1432 = vpop.f32.mrf.mxu0
      %v1433 = vadd.f32 %v1127, %v1432
      %v1434 = vpop.f32.mrf.mxu0
      %v1435 = vadd.f32 %v1127, %v1434
      %1436 = vdwg.mxu0
      %1437 = vmatpush.bf16.msra.mxu0 %v1257
      %1438 = vmatpush.bf16.msra.mxu0 %v1255
      %1439 = vmatpush.bf16.msra.mxu0 %v1253
      %1440 = vmatpush.bf16.msra.mxu0 %v1251
      %1441 = vmatpush.bf16.msra.mxu0 %v1249
      %1442 = vmatpush.bf16.msra.mxu0 %v1247
      %1443 = vmatpush.bf16.msra.mxu0 %v1245
      %1444 = vmatpush.bf16.msra.mxu0 %v1243
      %1445 = vmatmul.bf16.gmra.mxu0 %v1077
      %v1446 = vpop.f32.mrf.mxu0
      %v1447 = vadd.f32 %v1398, %v1446
      %v1448 = vpop.f32.mrf.mxu0
      %v1449 = vadd.f32 %v1400, %v1448
      %1450 = vmatmul.bf16.gmra.mxu0 %v1079
      %v1451 = vpop.f32.mrf.mxu0
      %v1452 = vadd.f32 %v1403, %v1451
      %v1453 = vpop.f32.mrf.mxu0
      %v1454 = vadd.f32 %v1405, %v1453
      %1455 = vmatmul.bf16.gmra.mxu0 %v1081
      %v1456 = vpop.f32.mrf.mxu0
      %v1457 = vadd.f32 %v1408, %v1456
      %v1458 = vpop.f32.mrf.mxu0
      %v1459 = vadd.f32 %v1410, %v1458
      %1460 = vmatmul.bf16.gmra.mxu0 %v1083
      %v1461 = vpop.f32.mrf.mxu0
      %v1462 = vadd.f32 %v1413, %v1461
      %v1463 = vpop.f32.mrf.mxu0
      %v1464 = vadd.f32 %v1415, %v1463
      %1465 = vmatmul.bf16.gmra.mxu0 %v1085
      %v1466 = vpop.f32.mrf.mxu0
      %v1467 = vadd.f32 %v1418, %v1466
      %v1468 = vpop.f32.mrf.mxu0
      %v1469 = vadd.f32 %v1420, %v1468
      %1470 = vmatmul.bf16.gmra.mxu0 %v1087
      %v1471 = vpop.f32.mrf.mxu0
      %v1472 = vadd.f32 %v1423, %v1471
      %v1473 = vpop.f32.mrf.mxu0
      %v1474 = vadd.f32 %v1425, %v1473
      %1475 = vmatmul.bf16.gmra.mxu0 %v1089
      %v1476 = vpop.f32.mrf.mxu0
      %v1477 = vadd.f32 %v1428, %v1476
      %v1478 = vpop.f32.mrf.mxu0
      %v1479 = vadd.f32 %v1430, %v1478
      %1480 = vmatmul.bf16.gmra.mxu0 %v1091
      %v1481 = vpop.f32.mrf.mxu0
      %v1482 = vadd.f32 %v1433, %v1481
      %v1483 = vpop.f32.mrf.mxu0
      %v1484 = vadd.f32 %v1435, %v1483
      %1485 = vdwg.mxu0
      %v1486 = vmax.f32 %v1349, 0.0
      %v1487 = vmax.f32 %v1447, 0.0
      %v1488 = vmax.f32 %v1351, 0.0
      %v1489 = vmax.f32 %v1449, 0.0
      %v1490 = vmax.f32 %v1354, 0.0
      %v1491 = vmax.f32 %v1452, 0.0
      %v1492 = vmax.f32 %v1356, 0.0
      %v1493 = vmax.f32 %v1454, 0.0
      %v1494 = vmax.f32 %v1359, 0.0
      %v1495 = vmax.f32 %v1457, 0.0
      %v1496 = vmax.f32 %v1361, 0.0
      %v1497 = vmax.f32 %v1459, 0.0
      %v1498 = vmax.f32 %v1364, 0.0
      %v1499 = vmax.f32 %v1462, 0.0
      %v1500 = vmax.f32 %v1366, 0.0
      %v1501 = vmax.f32 %v1464, 0.0
      %v1502 = vmax.f32 %v1369, 0.0
      %v1503 = vmax.f32 %v1467, 0.0
      %v1504 = vmax.f32 %v1371, 0.0
      %v1505 = vmax.f32 %v1469, 0.0
      %v1506 = vmax.f32 %v1374, 0.0
      %v1507 = vmax.f32 %v1472, 0.0
      %v1508 = vmax.f32 %v1376, 0.0
      %v1509 = vmax.f32 %v1474, 0.0
      %v1510 = vmax.f32 %v1379, 0.0
      %v1511 = vmax.f32 %v1477, 0.0
      %v1512 = vmax.f32 %v1381, 0.0
      %v1513 = vmax.f32 %v1479, 0.0
      %v1514 = vmax.f32 %v1384, 0.0
      %v1515 = vmax.f32 %v1482, 0.0
      %v1516 = vmax.f32 %v1386, 0.0
      %v1517 = vmax.f32 %v1484, 0.0
      %v1518 = vpack.c.bf16 %v1488, %v1486
      %v1519 = vpack.c.bf16 %v1489, %v1487
      %v1520 = vpack.c.bf16 %v1492, %v1490
      %v1521 = vpack.c.bf16 %v1493, %v1491
      %v1522 = vpack.c.bf16 %v1496, %v1494
      %v1523 = vpack.c.bf16 %v1497, %v1495
      %v1524 = vpack.c.bf16 %v1500, %v1498
      %v1525 = vpack.c.bf16 %v1501, %v1499
      %v1526 = vpack.c.bf16 %v1504, %v1502
      %v1527 = vpack.c.bf16 %v1505, %v1503
      %v1528 = vpack.c.bf16 %v1508, %v1506
      %v1529 = vpack.c.bf16 %v1509, %v1507
      %v1530 = vpack.c.bf16 %v1512, %v1510
      %v1531 = vpack.c.bf16 %v1513, %v1511
      %v1532 = vpack.c.bf16 %v1516, %v1514
      %v1533 = vpack.c.bf16 %v1517, %v1515
      %v1534 = vld [vmem:[%s7] sm:$0xff]
      %v1535 = vld [vmem:[%s7 + $0x8] sm:$0xff]
      %v1536 = vld [vmem:[%s7 + $0x10] sm:$0xff]
      %v1537 = vld [vmem:[%s7 + $0x18] sm:$0xff]
      %v1538 = vld [vmem:[%s7 + $0x20] sm:$0xff]
      %v1539 = vld [vmem:[%s7 + $0x28] sm:$0xff]
      %v1540 = vld [vmem:[%s7 + $0x30] sm:$0xff]
      %v1541 = vld [vmem:[%s7 + $0x38] sm:$0xff]
      %v1542 = vld [vmem:[%s7 + $0x40] sm:$0xff]
      %v1543 = vld [vmem:[%s7 + $0x48] sm:$0xff]
      %v1544 = vld [vmem:[%s7 + $0x50] sm:$0xff]
      %v1545 = vld [vmem:[%s7 + $0x58] sm:$0xff]
      %v1546 = vld [vmem:[%s7 + $0x60] sm:$0xff]
      %v1547 = vld [vmem:[%s7 + $0x68] sm:$0xff]
      %v1548 = vld [vmem:[%s7 + $0x70] sm:$0xff]
      %v1549 = vld [vmem:[%s7 + $0x78] sm:$0xff]
      %v1550 = vld [vmem:[%s7 + $0x80] sm:$0xff]
      %v1551 = vld [vmem:[%s7 + $0x88] sm:$0xff]
      %v1552 = vld [vmem:[%s7 + $0x90] sm:$0xff]
      %v1553 = vld [vmem:[%s7 + $0x98] sm:$0xff]
      %v1554 = vld [vmem:[%s7 + $0xa0] sm:$0xff]
      %v1555 = vld [vmem:[%s7 + $0xa8] sm:$0xff]
      %v1556 = vld [vmem:[%s7 + $0xb0] sm:$0xff]
      %v1557 = vld [vmem:[%s7 + $0xb8] sm:$0xff]
      %v1558 = vld [vmem:[%s7 + $0xc0] sm:$0xff]
      %v1559 = vld [vmem:[%s7 + $0xc8] sm:$0xff]
      %v1560 = vld [vmem:[%s7 + $0xd0] sm:$0xff]
      %v1561 = vld [vmem:[%s7 + $0xd8] sm:$0xff]
      %v1562 = vld [vmem:[%s7 + $0xe0] sm:$0xff]
      %v1563 = vld [vmem:[%s7 + $0xe8] sm:$0xff]
      %v1564 = vld [vmem:[%s7 + $0xf0] sm:$0xff]
      %v1565 = vld [vmem:[%s7 + $0xf8] sm:$0xff]
      %v1566 = vld [vmem:[%s8] sm:$0x3]
      %v1568 = vperm.slane %v1566, 0
      %v1569 = vperm.slane %v1566, 1
      %v1604 = vunpack.c.l.b16 %v1534
      %v1605 = vunpack.c.h.b16 %v1534
      %v1606 = vunpack.c.l.b16 %v1535
      %v1607 = vunpack.c.h.b16 %v1535
      %v1608 = vunpack.c.l.b16 %v1536
      %v1609 = vunpack.c.h.b16 %v1536
      %v1610 = vunpack.c.l.b16 %v1537
      %v1611 = vunpack.c.h.b16 %v1537
      %v1612 = vunpack.c.l.b16 %v1538
      %v1613 = vunpack.c.h.b16 %v1538
      %v1614 = vunpack.c.l.b16 %v1539
      %v1615 = vunpack.c.h.b16 %v1539
      %v1616 = vunpack.c.l.b16 %v1540
      %v1617 = vunpack.c.h.b16 %v1540
      %v1618 = vunpack.c.l.b16 %v1541
      %v1619 = vunpack.c.h.b16 %v1541
      %v1620 = vunpack.c.l.b16 %v1542
      %v1621 = vunpack.c.h.b16 %v1542
      %v1622 = vunpack.c.l.b16 %v1543
      %v1623 = vunpack.c.h.b16 %v1543
      %v1624 = vunpack.c.l.b16 %v1544
      %v1625 = vunpack.c.h.b16 %v1544
      %v1626 = vunpack.c.l.b16 %v1545
      %v1627 = vunpack.c.h.b16 %v1545
      %v1628 = vunpack.c.l.b16 %v1546
      %v1629 = vunpack.c.h.b16 %v1546
      %v1630 = vunpack.c.l.b16 %v1547
      %v1631 = vunpack.c.h.b16 %v1547
      %v1632 = vunpack.c.l.b16 %v1548
      %v1633 = vunpack.c.h.b16 %v1548
      %v1634 = vunpack.c.l.b16 %v1549
      %v1635 = vunpack.c.h.b16 %v1549
      %v1636 = vunpack.c.l.b16 %v1550
      %v1637 = vunpack.c.h.b16 %v1550
      %v1638 = vunpack.c.l.b16 %v1551
      %v1639 = vunpack.c.h.b16 %v1551
      %v1640 = vunpack.c.l.b16 %v1552
      %v1641 = vunpack.c.h.b16 %v1552
      %v1642 = vunpack.c.l.b16 %v1553
      %v1643 = vunpack.c.h.b16 %v1553
      %v1644 = vunpack.c.l.b16 %v1554
      %v1645 = vunpack.c.h.b16 %v1554
      %v1646 = vunpack.c.l.b16 %v1555
      %v1647 = vunpack.c.h.b16 %v1555
      %v1648 = vunpack.c.l.b16 %v1556
      %v1649 = vunpack.c.h.b16 %v1556
      %v1650 = vunpack.c.l.b16 %v1557
      %v1651 = vunpack.c.h.b16 %v1557
      %v1652 = vunpack.c.l.b16 %v1558
      %v1653 = vunpack.c.h.b16 %v1558
      %v1654 = vunpack.c.l.b16 %v1559
      %v1655 = vunpack.c.h.b16 %v1559
      %v1656 = vunpack.c.l.b16 %v1560
      %v1657 = vunpack.c.h.b16 %v1560
      %v1658 = vunpack.c.l.b16 %v1561
      %v1659 = vunpack.c.h.b16 %v1561
      %v1660 = vunpack.c.l.b16 %v1562
      %v1661 = vunpack.c.h.b16 %v1562
      %v1662 = vunpack.c.l.b16 %v1563
      %v1663 = vunpack.c.h.b16 %v1563
      %v1664 = vunpack.c.l.b16 %v1564
      %v1665 = vunpack.c.h.b16 %v1564
      %v1666 = vunpack.c.l.b16 %v1565
      %v1667 = vunpack.c.h.b16 %v1565
      %v1668 = vpack.c.b16 %v1606, %v1604
      %v1669 = vpack.c.b16 %v1607, %v1605
      %v1670 = vpack.c.b16 %v1610, %v1608
      %v1671 = vpack.c.b16 %v1611, %v1609
      %v1672 = vpack.c.b16 %v1614, %v1612
      %v1673 = vpack.c.b16 %v1615, %v1613
      %v1674 = vpack.c.b16 %v1618, %v1616
      %v1675 = vpack.c.b16 %v1619, %v1617
      %v1676 = vpack.c.b16 %v1622, %v1620
      %v1677 = vpack.c.b16 %v1623, %v1621
      %v1678 = vpack.c.b16 %v1626, %v1624
      %v1679 = vpack.c.b16 %v1627, %v1625
      %v1680 = vpack.c.b16 %v1630, %v1628
      %v1681 = vpack.c.b16 %v1631, %v1629
      %v1682 = vpack.c.b16 %v1634, %v1632
      %v1683 = vpack.c.b16 %v1635, %v1633
      %v1684 = vpack.c.b16 %v1638, %v1636
      %v1685 = vpack.c.b16 %v1639, %v1637
      %v1686 = vpack.c.b16 %v1642, %v1640
      %v1687 = vpack.c.b16 %v1643, %v1641
      %v1688 = vpack.c.b16 %v1646, %v1644
      %v1689 = vpack.c.b16 %v1647, %v1645
      %v1690 = vpack.c.b16 %v1650, %v1648
      %v1691 = vpack.c.b16 %v1651, %v1649
      %v1692 = vpack.c.b16 %v1654, %v1652
      %v1693 = vpack.c.b16 %v1655, %v1653
      %v1694 = vpack.c.b16 %v1658, %v1656
      %v1695 = vpack.c.b16 %v1659, %v1657
      %v1696 = vpack.c.b16 %v1662, %v1660
      %v1697 = vpack.c.b16 %v1663, %v1661
      %v1698 = vpack.c.b16 %v1666, %v1664
      %v1699 = vpack.c.b16 %v1667, %v1665
      %1732 = vmatpush.bf16.msra.mxu0 %v1682
      %1733 = vmatpush.bf16.msra.mxu0 %v1680
      %1734 = vmatpush.bf16.msra.mxu0 %v1678
      %1735 = vmatpush.bf16.msra.mxu0 %v1676
      %1736 = vmatpush.bf16.msra.mxu0 %v1674
      %1737 = vmatpush.bf16.msra.mxu0 %v1672
      %1738 = vmatpush.bf16.msra.mxu0 %v1670
      %1739 = vmatpush.bf16.msra.mxu0 %v1668
      %1740 = vmatmul.bf16.gmra.mxu0 %v1518
      %v1741 = vpop.f32.mrf.mxu0
      %v1742 = vadd.f32 %v1568, %v1741
      %v1743 = vpop.f32.mrf.mxu0
      %v1744 = vadd.f32 %v1568, %v1743
      %1745 = vmatmul.bf16.gmra.mxu0 %v1520
      %v1746 = vpop.f32.mrf.mxu0
      %v1747 = vadd.f32 %v1568, %v1746
      %v1748 = vpop.f32.mrf.mxu0
      %v1749 = vadd.f32 %v1568, %v1748
      %1750 = vmatmul.bf16.gmra.mxu0 %v1522
      %v1751 = vpop.f32.mrf.mxu0
      %v1752 = vadd.f32 %v1568, %v1751
      %v1753 = vpop.f32.mrf.mxu0
      %v1754 = vadd.f32 %v1568, %v1753
      %1755 = vmatmul.bf16.gmra.mxu0 %v1524
      %v1756 = vpop.f32.mrf.mxu0
      %v1757 = vadd.f32 %v1568, %v1756
      %v1758 = vpop.f32.mrf.mxu0
      %v1759 = vadd.f32 %v1568, %v1758
      %1760 = vmatmul.bf16.gmra.mxu0 %v1526
      %v1761 = vpop.f32.mrf.mxu0
      %v1762 = vadd.f32 %v1568, %v1761
      %v1763 = vpop.f32.mrf.mxu0
      %v1764 = vadd.f32 %v1568, %v1763
      %1765 = vmatmul.bf16.gmra.mxu0 %v1528
      %v1766 = vpop.f32.mrf.mxu0
      %v1767 = vadd.f32 %v1568, %v1766
      %v1768 = vpop.f32.mrf.mxu0
      %v1769 = vadd.f32 %v1568, %v1768
      %1770 = vmatmul.bf16.gmra.mxu0 %v1530
      %v1771 = vpop.f32.mrf.mxu0
      %v1772 = vadd.f32 %v1568, %v1771
      %v1773 = vpop.f32.mrf.mxu0
      %v1774 = vadd.f32 %v1568, %v1773
      %1775 = vmatmul.bf16.gmra.mxu0 %v1532
      %v1776 = vpop.f32.mrf.mxu0
      %v1777 = vadd.f32 %v1568, %v1776
      %v1778 = vpop.f32.mrf.mxu0
      %v1779 = vadd.f32 %v1568, %v1778
      %1780 = vdwg.mxu0
      %1781 = vmatpush.bf16.msra.mxu0 %v1698
      %1782 = vmatpush.bf16.msra.mxu0 %v1696
      %1783 = vmatpush.bf16.msra.mxu0 %v1694
      %1784 = vmatpush.bf16.msra.mxu0 %v1692
      %1785 = vmatpush.bf16.msra.mxu0 %v1690
      %1786 = vmatpush.bf16.msra.mxu0 %v1688
      %1787 = vmatpush.bf16.msra.mxu0 %v1686
      %1788 = vmatpush.bf16.msra.mxu0 %v1684
      %1789 = vmatmul.bf16.gmra.mxu0 %v1519
      %v1790 = vpop.f32.mrf.mxu0
      %v1791 = vadd.f32 %v1742, %v1790
      %v1792 = vpop.f32.mrf.mxu0
      %v1793 = vadd.f32 %v1744, %v1792
      %1794 = vmatmul.bf16.gmra.mxu0 %v1521
      %v1795 = vpop.f32.mrf.mxu0
      %v1796 = vadd.f32 %v1747, %v1795
      %v1797 = vpop.f32.mrf.mxu0
      %v1798 = vadd.f32 %v1749, %v1797
      %1799 = vmatmul.bf16.gmra.mxu0 %v1523
      %v1800 = vpop.f32.mrf.mxu0
      %v1801 = vadd.f32 %v1752, %v1800
      %v1802 = vpop.f32.mrf.mxu0
      %v1803 = vadd.f32 %v1754, %v1802
      %1804 = vmatmul.bf16.gmra.mxu0 %v1525
      %v1805 = vpop.f32.mrf.mxu0
      %v1806 = vadd.f32 %v1757, %v1805
      %v1807 = vpop.f32.mrf.mxu0
      %v1808 = vadd.f32 %v1759, %v1807
      %1809 = vmatmul.bf16.gmra.mxu0 %v1527
      %v1810 = vpop.f32.mrf.mxu0
      %v1811 = vadd.f32 %v1762, %v1810
      %v1812 = vpop.f32.mrf.mxu0
      %v1813 = vadd.f32 %v1764, %v1812
      %1814 = vmatmul.bf16.gmra.mxu0 %v1529
      %v1815 = vpop.f32.mrf.mxu0
      %v1816 = vadd.f32 %v1767, %v1815
      %v1817 = vpop.f32.mrf.mxu0
      %v1818 = vadd.f32 %v1769, %v1817
      %1819 = vmatmul.bf16.gmra.mxu0 %v1531
      %v1820 = vpop.f32.mrf.mxu0
      %v1821 = vadd.f32 %v1772, %v1820
      %v1822 = vpop.f32.mrf.mxu0
      %v1823 = vadd.f32 %v1774, %v1822
      %1824 = vmatmul.bf16.gmra.mxu0 %v1533
      %v1825 = vpop.f32.mrf.mxu0
      %v1826 = vadd.f32 %v1777, %v1825
      %v1827 = vpop.f32.mrf.mxu0
      %v1828 = vadd.f32 %v1779, %v1827
      %1829 = vdwg.mxu0
      %1830 = vmatpush.bf16.msra.mxu0 %v1683
      %1831 = vmatpush.bf16.msra.mxu0 %v1681
      %1832 = vmatpush.bf16.msra.mxu0 %v1679
      %1833 = vmatpush.bf16.msra.mxu0 %v1677
      %1834 = vmatpush.bf16.msra.mxu0 %v1675
      %1835 = vmatpush.bf16.msra.mxu0 %v1673
      %1836 = vmatpush.bf16.msra.mxu0 %v1671
      %1837 = vmatpush.bf16.msra.mxu0 %v1669
      %1838 = vmatmul.bf16.gmra.mxu0 %v1518
      %v1839 = vpop.f32.mrf.mxu0
      %v1840 = vadd.f32 %v1569, %v1839
      %v1841 = vpop.f32.mrf.mxu0
      %v1842 = vadd.f32 %v1569, %v1841
      %1843 = vmatmul.bf16.gmra.mxu0 %v1520
      %v1844 = vpop.f32.mrf.mxu0
      %v1845 = vadd.f32 %v1569, %v1844
      %v1846 = vpop.f32.mrf.mxu0
      %v1847 = vadd.f32 %v1569, %v1846
      %1848 = vmatmul.bf16.gmra.mxu0 %v1522
      %v1849 = vpop.f32.mrf.mxu0
      %v1850 = vadd.f32 %v1569, %v1849
      %v1851 = vpop.f32.mrf.mxu0
      %v1852 = vadd.f32 %v1569, %v1851
      %1853 = vmatmul.bf16.gmra.mxu0 %v1524
      %v1854 = vpop.f32.mrf.mxu0
      %v1855 = vadd.f32 %v1569, %v1854
      %v1856 = vpop.f32.mrf.mxu0
      %v1857 = vadd.f32 %v1569, %v1856
      %1858 = vmatmul.bf16.gmra.mxu0 %v1526
      %v1859 = vpop.f32.mrf.mxu0
      %v1860 = vadd.f32 %v1569, %v1859
      %v1861 = vpop.f32.mrf.mxu0
      %v1862 = vadd.f32 %v1569, %v1861
      %1863 = vmatmul.bf16.gmra.mxu0 %v1528
      %v1864 = vpop.f32.mrf.mxu0
      %v1865 = vadd.f32 %v1569, %v1864
      %v1866 = vpop.f32.mrf.mxu0
      %v1867 = vadd.f32 %v1569, %v1866
      %1868 = vmatmul.bf16.gmra.mxu0 %v1530
      %v1869 = vpop.f32.mrf.mxu0
      %v1870 = vadd.f32 %v1569, %v1869
      %v1871 = vpop.f32.mrf.mxu0
      %v1872 = vadd.f32 %v1569, %v1871
      %1873 = vmatmul.bf16.gmra.mxu0 %v1532
      %v1874 = vpop.f32.mrf.mxu0
      %v1875 = vadd.f32 %v1569, %v1874
      %v1876 = vpop.f32.mrf.mxu0
      %v1877 = vadd.f32 %v1569, %v1876
      %1878 = vdwg.mxu0
      %1879 = vmatpush.bf16.msra.mxu0 %v1699
      %1880 = vmatpush.bf16.msra.mxu0 %v1697
      %1881 = vmatpush.bf16.msra.mxu0 %v1695
      %1882 = vmatpush.bf16.msra.mxu0 %v1693
      %1883 = vmatpush.bf16.msra.mxu0 %v1691
      %1884 = vmatpush.bf16.msra.mxu0 %v1689
      %1885 = vmatpush.bf16.msra.mxu0 %v1687
      %1886 = vmatpush.bf16.msra.mxu0 %v1685
      %1887 = vmatmul.bf16.gmra.mxu0 %v1519
      %v1888 = vpop.f32.mrf.mxu0
      %v1889 = vadd.f32 %v1840, %v1888
      %v1890 = vpop.f32.mrf.mxu0
      %v1891 = vadd.f32 %v1842, %v1890
      %1892 = vmatmul.bf16.gmra.mxu0 %v1521
      %v1893 = vpop.f32.mrf.mxu0
      %v1894 = vadd.f32 %v1845, %v1893
      %v1895 = vpop.f32.mrf.mxu0
      %v1896 = vadd.f32 %v1847, %v1895
      %1897 = vmatmul.bf16.gmra.mxu0 %v1523
      %v1898 = vpop.f32.mrf.mxu0
      %v1899 = vadd.f32 %v1850, %v1898
      %v1900 = vpop.f32.mrf.mxu0
      %v1901 = vadd.f32 %v1852, %v1900
      %1902 = vmatmul.bf16.gmra.mxu0 %v1525
      %v1903 = vpop.f32.mrf.mxu0
      %v1904 = vadd.f32 %v1855, %v1903
      %v1905 = vpop.f32.mrf.mxu0
      %v1906 = vadd.f32 %v1857, %v1905
      %1907 = vmatmul.bf16.gmra.mxu0 %v1527
      %v1908 = vpop.f32.mrf.mxu0
      %v1909 = vadd.f32 %v1860, %v1908
      %v1910 = vpop.f32.mrf.mxu0
      %v1911 = vadd.f32 %v1862, %v1910
      %1912 = vmatmul.bf16.gmra.mxu0 %v1529
      %v1913 = vpop.f32.mrf.mxu0
      %v1914 = vadd.f32 %v1865, %v1913
      %v1915 = vpop.f32.mrf.mxu0
      %v1916 = vadd.f32 %v1867, %v1915
      %1917 = vmatmul.bf16.gmra.mxu0 %v1531
      %v1918 = vpop.f32.mrf.mxu0
      %v1919 = vadd.f32 %v1870, %v1918
      %v1920 = vpop.f32.mrf.mxu0
      %v1921 = vadd.f32 %v1872, %v1920
      %1922 = vmatmul.bf16.gmra.mxu0 %v1533
      %v1923 = vpop.f32.mrf.mxu0
      %v1924 = vadd.f32 %v1875, %v1923
      %v1925 = vpop.f32.mrf.mxu0
      %v1926 = vadd.f32 %v1877, %v1925
      %1927 = vdwg.mxu0
      %v1928 = vmax.f32 %v1791, 0.0
      %v1929 = vmax.f32 %v1889, 0.0
      %v1930 = vmax.f32 %v1793, 0.0
      %v1931 = vmax.f32 %v1891, 0.0
      %v1932 = vmax.f32 %v1796, 0.0
      %v1933 = vmax.f32 %v1894, 0.0
      %v1934 = vmax.f32 %v1798, 0.0
      %v1935 = vmax.f32 %v1896, 0.0
      %v1936 = vmax.f32 %v1801, 0.0
      %v1937 = vmax.f32 %v1899, 0.0
      %v1938 = vmax.f32 %v1803, 0.0
      %v1939 = vmax.f32 %v1901, 0.0
      %v1940 = vmax.f32 %v1806, 0.0
      %v1941 = vmax.f32 %v1904, 0.0
      %v1942 = vmax.f32 %v1808, 0.0
      %v1943 = vmax.f32 %v1906, 0.0
      %v1944 = vmax.f32 %v1811, 0.0
      %v1945 = vmax.f32 %v1909, 0.0
      %v1946 = vmax.f32 %v1813, 0.0
      %v1947 = vmax.f32 %v1911, 0.0
      %v1948 = vmax.f32 %v1816, 0.0
      %v1949 = vmax.f32 %v1914, 0.0
      %v1950 = vmax.f32 %v1818, 0.0
      %v1951 = vmax.f32 %v1916, 0.0
      %v1952 = vmax.f32 %v1821, 0.0
      %v1953 = vmax.f32 %v1919, 0.0
      %v1954 = vmax.f32 %v1823, 0.0
      %v1955 = vmax.f32 %v1921, 0.0
      %v1956 = vmax.f32 %v1826, 0.0
      %v1957 = vmax.f32 %v1924, 0.0
      %v1958 = vmax.f32 %v1828, 0.0
      %v1959 = vmax.f32 %v1926, 0.0
      %v1960 = vpack.c.bf16 %v1930, %v1928
      %v1961 = vpack.c.bf16 %v1931, %v1929
      %v1962 = vpack.c.bf16 %v1934, %v1932
      %v1963 = vpack.c.bf16 %v1935, %v1933
      %v1964 = vpack.c.bf16 %v1938, %v1936
      %v1965 = vpack.c.bf16 %v1939, %v1937
      %v1966 = vpack.c.bf16 %v1942, %v1940
      %v1967 = vpack.c.bf16 %v1943, %v1941
      %v1968 = vpack.c.bf16 %v1946, %v1944
      %v1969 = vpack.c.bf16 %v1947, %v1945
      %v1970 = vpack.c.bf16 %v1950, %v1948
      %v1971 = vpack.c.bf16 %v1951, %v1949
      %v1972 = vpack.c.bf16 %v1954, %v1952
      %v1973 = vpack.c.bf16 %v1955, %v1953
      %v1974 = vpack.c.bf16 %v1958, %v1956
      %v1975 = vpack.c.bf16 %v1959, %v1957
      %v1976 = vld [vmem:[%s9] sm:$0xf]
      %v1977 = vld [vmem:[%s9 + $0x4] sm:$0xf]
      %v1978 = vld [vmem:[%s9 + $0x8] sm:$0xf]
      %v1979 = vld [vmem:[%s9 + $0xc] sm:$0xf]
      %v1980 = vld [vmem:[%s9 + $0x10] sm:$0xf]
      %v1981 = vld [vmem:[%s9 + $0x14] sm:$0xf]
      %v1982 = vld [vmem:[%s9 + $0x18] sm:$0xf]
      %v1983 = vld [vmem:[%s9 + $0x1c] sm:$0xf]
      %v1984 = vld [vmem:[%s9 + $0x20] sm:$0xf]
      %v1985 = vld [vmem:[%s9 + $0x24] sm:$0xf]
      %v1986 = vld [vmem:[%s9 + $0x28] sm:$0xf]
      %v1987 = vld [vmem:[%s9 + $0x2c] sm:$0xf]
      %v1988 = vld [vmem:[%s9 + $0x30] sm:$0xf]
      %v1989 = vld [vmem:[%s9 + $0x34] sm:$0xf]
      %v1990 = vld [vmem:[%s9 + $0x38] sm:$0xf]
      %v1991 = vld [vmem:[%s9 + $0x3c] sm:$0xf]
      %v1992 = vld [vmem:[%s9 + $0x40] sm:$0xf]
      %v1993 = vld [vmem:[%s9 + $0x44] sm:$0xf]
      %v1994 = vld [vmem:[%s9 + $0x48] sm:$0xf]
      %v1995 = vld [vmem:[%s9 + $0x4c] sm:$0xf]
      %v1996 = vld [vmem:[%s9 + $0x50] sm:$0xf]
      %v1997 = vld [vmem:[%s9 + $0x54] sm:$0xf]
      %v1998 = vld [vmem:[%s9 + $0x58] sm:$0xf]
      %v1999 = vld [vmem:[%s9 + $0x5c] sm:$0xf]
      %v2000 = vld [vmem:[%s9 + $0x60] sm:$0xf]
      %v2001 = vld [vmem:[%s9 + $0x64] sm:$0xf]
      %v2002 = vld [vmem:[%s9 + $0x68] sm:$0xf]
      %v2003 = vld [vmem:[%s9 + $0x6c] sm:$0xf]
      %v2004 = vld [vmem:[%s9 + $0x70] sm:$0xf]
      %v2005 = vld [vmem:[%s9 + $0x74] sm:$0xf]
      %v2006 = vld [vmem:[%s9 + $0x78] sm:$0xf]
      %v2007 = vld [vmem:[%s9 + $0x7c] sm:$0xf]
      %v2008 = vld [vmem:[%s10] sm:$0x1]
      %v2010 = vperm.slane %v2008, 0
      %v2044 = vunpack.c.l.b16 %v1976
      %v2045 = vunpack.c.l.b16 %v1977
      %v2046 = vunpack.c.l.b16 %v1978
      %v2047 = vunpack.c.l.b16 %v1979
      %v2048 = vunpack.c.l.b16 %v1980
      %v2049 = vunpack.c.l.b16 %v1981
      %v2050 = vunpack.c.l.b16 %v1982
      %v2051 = vunpack.c.l.b16 %v1983
      %v2052 = vunpack.c.l.b16 %v1984
      %v2053 = vunpack.c.l.b16 %v1985
      %v2054 = vunpack.c.l.b16 %v1986
      %v2055 = vunpack.c.l.b16 %v1987
      %v2056 = vunpack.c.l.b16 %v1988
      %v2057 = vunpack.c.l.b16 %v1989
      %v2058 = vunpack.c.l.b16 %v1990
      %v2059 = vunpack.c.l.b16 %v1991
      %v2060 = vunpack.c.l.b16 %v1992
      %v2061 = vunpack.c.l.b16 %v1993
      %v2062 = vunpack.c.l.b16 %v1994
      %v2063 = vunpack.c.l.b16 %v1995
      %v2064 = vunpack.c.l.b16 %v1996
      %v2065 = vunpack.c.l.b16 %v1997
      %v2066 = vunpack.c.l.b16 %v1998
      %v2067 = vunpack.c.l.b16 %v1999
      %v2068 = vunpack.c.l.b16 %v2000
      %v2069 = vunpack.c.l.b16 %v2001
      %v2070 = vunpack.c.l.b16 %v2002
      %v2071 = vunpack.c.l.b16 %v2003
      %v2072 = vunpack.c.l.b16 %v2004
      %v2073 = vunpack.c.l.b16 %v2005
      %v2074 = vunpack.c.l.b16 %v2006
      %v2075 = vunpack.c.l.b16 %v2007
      %v2076 = vpack.c.b16 %v2045, %v2044
      %v2077 = vpack.c.b16 %v2047, %v2046
      %v2078 = vpack.c.b16 %v2049, %v2048
      %v2079 = vpack.c.b16 %v2051, %v2050
      %v2080 = vpack.c.b16 %v2053, %v2052
      %v2081 = vpack.c.b16 %v2055, %v2054
      %v2082 = vpack.c.b16 %v2057, %v2056
      %v2083 = vpack.c.b16 %v2059, %v2058
      %v2084 = vpack.c.b16 %v2061, %v2060
      %v2085 = vpack.c.b16 %v2063, %v2062
      %v2086 = vpack.c.b16 %v2065, %v2064
      %v2087 = vpack.c.b16 %v2067, %v2066
      %v2088 = vpack.c.b16 %v2069, %v2068
      %v2089 = vpack.c.b16 %v2071, %v2070
      %v2090 = vpack.c.b16 %v2073, %v2072
      %v2091 = vpack.c.b16 %v2075, %v2074
      %2108 = vmatpush.bf16.msra.mxu0 %v2083
      %2109 = vmatpush.bf16.msra.mxu0 %v2082
      %2110 = vmatpush.bf16.msra.mxu0 %v2081
      %2111 = vmatpush.bf16.msra.mxu0 %v2080
      %2112 = vmatpush.bf16.msra.mxu0 %v2079
      %2113 = vmatpush.bf16.msra.mxu0 %v2078
      %2114 = vmatpush.bf16.msra.mxu0 %v2077
      %2115 = vmatpush.bf16.msra.mxu0 %v2076
      %2116 = vmatmul.bf16.gmra.mxu0 %v1960
      %v2117 = vpop.f32.mrf.mxu0
      %v2118 = vadd.f32 %v2010, %v2117
      %v2119 = vpop.f32.mrf.mxu0
      %v2120 = vadd.f32 %v2010, %v2119
      %2121 = vmatmul.bf16.gmra.mxu0 %v1962
      %v2122 = vpop.f32.mrf.mxu0
      %v2123 = vadd.f32 %v2010, %v2122
      %v2124 = vpop.f32.mrf.mxu0
      %v2125 = vadd.f32 %v2010, %v2124
      %2126 = vmatmul.bf16.gmra.mxu0 %v1964
      %v2127 = vpop.f32.mrf.mxu0
      %v2128 = vadd.f32 %v2010, %v2127
      %v2129 = vpop.f32.mrf.mxu0
      %v2130 = vadd.f32 %v2010, %v2129
      %2131 = vmatmul.bf16.gmra.mxu0 %v1966
      %v2132 = vpop.f32.mrf.mxu0
      %v2133 = vadd.f32 %v2010, %v2132
      %v2134 = vpop.f32.mrf.mxu0
      %v2135 = vadd.f32 %v2010, %v2134
      %2136 = vmatmul.bf16.gmra.mxu0 %v1968
      %v2137 = vpop.f32.mrf.mxu0
      %v2138 = vadd.f32 %v2010, %v2137
      %v2139 = vpop.f32.mrf.mxu0
      %v2140 = vadd.f32 %v2010, %v2139
      %2141 = vmatmul.bf16.gmra.mxu0 %v1970
      %v2142 = vpop.f32.mrf.mxu0
      %v2143 = vadd.f32 %v2010, %v2142
      %v2144 = vpop.f32.mrf.mxu0
      %v2145 = vadd.f32 %v2010, %v2144
      %2146 = vmatmul.bf16.gmra.mxu0 %v1972
      %v2147 = vpop.f32.mrf.mxu0
      %v2148 = vadd.f32 %v2010, %v2147
      %v2149 = vpop.f32.mrf.mxu0
      %v2150 = vadd.f32 %v2010, %v2149
      %2151 = vmatmul.bf16.gmra.mxu0 %v1974
      %v2152 = vpop.f32.mrf.mxu0
      %v2153 = vadd.f32 %v2010, %v2152
      %v2154 = vpop.f32.mrf.mxu0
      %v2155 = vadd.f32 %v2010, %v2154
      %2156 = vdwg.mxu0
      %2157 = vmatpush.bf16.msra.mxu0 %v2091
      %2158 = vmatpush.bf16.msra.mxu0 %v2090
      %2159 = vmatpush.bf16.msra.mxu0 %v2089
      %2160 = vmatpush.bf16.msra.mxu0 %v2088
      %2161 = vmatpush.bf16.msra.mxu0 %v2087
      %2162 = vmatpush.bf16.msra.mxu0 %v2086
      %2163 = vmatpush.bf16.msra.mxu0 %v2085
      %2164 = vmatpush.bf16.msra.mxu0 %v2084
      %2165 = vmatmul.bf16.gmra.mxu0 %v1961
      %v2166 = vpop.f32.mrf.mxu0
      %v2167 = vadd.f32 %v2118, %v2166
      %v2168 = vpop.f32.mrf.mxu0
      %v2169 = vadd.f32 %v2120, %v2168
      %2170 = vmatmul.bf16.gmra.mxu0 %v1963
      %v2171 = vpop.f32.mrf.mxu0
      %v2172 = vadd.f32 %v2123, %v2171
      %v2173 = vpop.f32.mrf.mxu0
      %v2174 = vadd.f32 %v2125, %v2173
      %2175 = vmatmul.bf16.gmra.mxu0 %v1965
      %v2176 = vpop.f32.mrf.mxu0
      %v2177 = vadd.f32 %v2128, %v2176
      %v2178 = vpop.f32.mrf.mxu0
      %v2179 = vadd.f32 %v2130, %v2178
      %2180 = vmatmul.bf16.gmra.mxu0 %v1967
      %v2181 = vpop.f32.mrf.mxu0
      %v2182 = vadd.f32 %v2133, %v2181
      %v2183 = vpop.f32.mrf.mxu0
      %v2184 = vadd.f32 %v2135, %v2183
      %2185 = vmatmul.bf16.gmra.mxu0 %v1969
      %v2186 = vpop.f32.mrf.mxu0
      %v2187 = vadd.f32 %v2138, %v2186
      %v2188 = vpop.f32.mrf.mxu0
      %v2189 = vadd.f32 %v2140, %v2188
      %2190 = vmatmul.bf16.gmra.mxu0 %v1971
      %v2191 = vpop.f32.mrf.mxu0
      %v2192 = vadd.f32 %v2143, %v2191
      %v2193 = vpop.f32.mrf.mxu0
      %v2194 = vadd.f32 %v2145, %v2193
      %2195 = vmatmul.bf16.gmra.mxu0 %v1973
      %v2196 = vpop.f32.mrf.mxu0
      %v2197 = vadd.f32 %v2148, %v2196
      %v2198 = vpop.f32.mrf.mxu0
      %v2199 = vadd.f32 %v2150, %v2198
      %2200 = vmatmul.bf16.gmra.mxu0 %v1975
      %v2201 = vpop.f32.mrf.mxu0
      %v2202 = vadd.f32 %v2153, %v2201
      %v2203 = vpop.f32.mrf.mxu0
      %v2204 = vadd.f32 %v2155, %v2203
      %2205 = vdwg.mxu0
      %v2206 = vsub.f32 0.0, %v2167
      %v2207 = vsub.f32 0.0, %v2169
      %v2208 = vsub.f32 0.0, %v2172
      %v2209 = vsub.f32 0.0, %v2174
      %v2210 = vsub.f32 0.0, %v2177
      %v2211 = vsub.f32 0.0, %v2179
      %v2212 = vsub.f32 0.0, %v2182
      %v2213 = vsub.f32 0.0, %v2184
      %v2214 = vsub.f32 0.0, %v2187
      %v2215 = vsub.f32 0.0, %v2189
      %v2216 = vsub.f32 0.0, %v2192
      %v2217 = vsub.f32 0.0, %v2194
      %v2218 = vsub.f32 0.0, %v2197
      %v2219 = vsub.f32 0.0, %v2199
      %v2220 = vsub.f32 0.0, %v2202
      %v2221 = vsub.f32 0.0, %v2204
      %v2222 = vmul.f32 %v2206, 1.442695
      %v2223 = vpow.pop %v2222
      %v2224 = vmul.f32 %v2207, 1.442695
      %v2225 = vpow.pop %v2224
      %v2226 = vmul.f32 %v2208, 1.442695
      %v2227 = vpow.pop %v2226
      %v2228 = vmul.f32 %v2209, 1.442695
      %v2229 = vpow.pop %v2228
      %v2230 = vmul.f32 %v2210, 1.442695
      %v2231 = vpow.pop %v2230
      %v2232 = vmul.f32 %v2211, 1.442695
      %v2233 = vpow.pop %v2232
      %v2234 = vmul.f32 %v2212, 1.442695
      %v2235 = vpow.pop %v2234
      %v2236 = vmul.f32 %v2213, 1.442695
      %v2237 = vpow.pop %v2236
      %v2238 = vmul.f32 %v2214, 1.442695
      %v2239 = vpow.pop %v2238
      %v2240 = vmul.f32 %v2215, 1.442695
      %v2241 = vpow.pop %v2240
      %v2242 = vmul.f32 %v2216, 1.442695
      %v2243 = vpow.pop %v2242
      %v2244 = vmul.f32 %v2217, 1.442695
      %v2245 = vpow.pop %v2244
      %v2246 = vmul.f32 %v2218, 1.442695
      %v2247 = vpow.pop %v2246
      %v2248 = vmul.f32 %v2219, 1.442695
      %v2249 = vpow.pop %v2248
      %v2250 = vmul.f32 %v2220, 1.442695
      %v2251 = vpow.pop %v2250
      %v2252 = vmul.f32 %v2221, 1.442695
      %v2253 = vpow.pop %v2252
      %v2254 = vadd.f32 %v2223, 1.0
      %v2255 = vadd.f32 %v2225, 1.0
      %v2256 = vadd.f32 %v2227, 1.0
      %v2257 = vadd.f32 %v2229, 1.0
      %v2258 = vadd.f32 %v2231, 1.0
      %v2259 = vadd.f32 %v2233, 1.0
      %v2260 = vadd.f32 %v2235, 1.0
      %v2261 = vadd.f32 %v2237, 1.0
      %v2262 = vadd.f32 %v2239, 1.0
      %v2263 = vadd.f32 %v2241, 1.0
      %v2264 = vadd.f32 %v2243, 1.0
      %v2265 = vadd.f32 %v2245, 1.0
      %v2266 = vadd.f32 %v2247, 1.0
      %v2267 = vadd.f32 %v2249, 1.0
      %v2268 = vadd.f32 %v2251, 1.0
      %v2269 = vadd.f32 %v2253, 1.0
      %v2270 = vrcp.pop %v2254
      %v2271 = vrcp.pop %v2255
      %v2272 = vrcp.pop %v2256
      %v2273 = vrcp.pop %v2257
      %v2274 = vrcp.pop %v2258
      %v2275 = vrcp.pop %v2259
      %v2276 = vrcp.pop %v2260
      %v2277 = vrcp.pop %v2261
      %v2278 = vrcp.pop %v2262
      %v2279 = vrcp.pop %v2263
      %v2280 = vrcp.pop %v2264
      %v2281 = vrcp.pop %v2265
      %v2282 = vrcp.pop %v2266
      %v2283 = vrcp.pop %v2267
      %v2284 = vrcp.pop %v2268
      %v2285 = vrcp.pop %v2269
      %v2286 = vpack.c.bf16 %v2270, %v2270
      %v2287 = vpack.c.bf16 %v2271, %v2271
      %v2288 = vpack.c.bf16 %v2272, %v2272
      %v2289 = vpack.c.bf16 %v2273, %v2273
      %v2290 = vpack.c.bf16 %v2274, %v2274
      %v2291 = vpack.c.bf16 %v2275, %v2275
      %v2292 = vpack.c.bf16 %v2276, %v2276
      %v2293 = vpack.c.bf16 %v2277, %v2277
      %v2294 = vpack.c.bf16 %v2278, %v2278
      %v2295 = vpack.c.bf16 %v2279, %v2279
      %v2296 = vpack.c.bf16 %v2280, %v2280
      %v2297 = vpack.c.bf16 %v2281, %v2281
      %v2298 = vpack.c.bf16 %v2282, %v2282
      %v2299 = vpack.c.bf16 %v2283, %v2283
      %v2300 = vpack.c.bf16 %v2284, %v2284
      %v2301 = vpack.c.bf16 %v2285, %v2285
      %2302 = vst [vmem:[%s388] sm:$0xf] %v2286
      %2303 = vst [vmem:[%s388 + $0x4] sm:$0xf] %v2287
      %2304 = vst [vmem:[%s388 + $0x8] sm:$0xf] %v2288
      %2305 = vst [vmem:[%s388 + $0xc] sm:$0xf] %v2289
      %2306 = vst [vmem:[%s388 + $0x10] sm:$0xf] %v2290
      %2307 = vst [vmem:[%s388 + $0x14] sm:$0xf] %v2291
      %2308 = vst [vmem:[%s388 + $0x18] sm:$0xf] %v2292
      %2309 = vst [vmem:[%s388 + $0x1c] sm:$0xf] %v2293
      %2310 = vst [vmem:[%s388 + $0x20] sm:$0xf] %v2294
      %2311 = vst [vmem:[%s388 + $0x24] sm:$0xf] %v2295
      %2312 = vst [vmem:[%s388 + $0x28] sm:$0xf] %v2296
      %2313 = vst [vmem:[%s388 + $0x2c] sm:$0xf] %v2297
      %2314 = vst [vmem:[%s388 + $0x30] sm:$0xf] %v2298
      %2315 = vst [vmem:[%s388 + $0x34] sm:$0xf] %v2299
      %2316 = vst [vmem:[%s388 + $0x38] sm:$0xf] %v2300
      %2317 = vst [vmem:[%s388 + $0x3c] sm:$0xf] %v2301
      %s2318 = smul.u32 16, %s22
      %p2319 = scmp.lt.s32.totalorder %s2318, 31
      %s2320 = scalar_select %p2319, %s2318, 31
      %s2321 = smul.addr %s2320, 4
      %s2322 = scalar_lea.vmem %s11, %s2321
      // Predicated region
      $region65: #{radiance_net_forward.1} parent=63 // pred_check
        %p2323 = pneg %p276
      $region66: #{radiance_net_forward.1} parent=63 // pred_check_branch
        %2325 = sbr.rel (%p2323) target = $region68
      $region67: #{radiance_net_forward.1} parent=63 // pred_region
        %s2326 = smul.u32 16, %s22
      $region68: #{radiance_net_forward.1} parent=63 // pred_fallthru
        _
    $region64: #{radiance_net_forward.1} parent=5 // pred_fallthru
      _
    %p2327 = scmp.le.s32.totalorder 2, %s17
    // Predicated region
    $region69: #{radiance_net_forward.1} parent=5 // pred_check
      %p2328 = pneg %p2327
    $region70: #{radiance_net_forward.1} parent=5 // pred_check_branch
      %2330 = sbr.rel (%p2328) target = $region72
    $region71: #{radiance_net_forward.1} parent=5 // pred_region
      %s2331 = ssub.s32 %s17, 2
      // Predicated region
      $region73: #{radiance_net_forward.1} parent=71 // pred_check
        %p2332 = pneg %p282
      $region74: #{radiance_net_forward.1} parent=71 // pred_check_branch
        %2334 = sbr.rel (%p2332) target = $region76
      $region75: #{radiance_net_forward.1} parent=71 // pred_region
        %s2335 = smul.u32 16, %s23
        %p2336 = scmp.lt.s32.totalorder %s2335, 31
        %s2337 = scalar_select %p2336, %s2335, 31
        %s2338 = smul.addr %s2337, 4
        %s2339 = scalar_lea.vmem %s11, %s2338
      $region76: #{radiance_net_forward.1} parent=71 // pred_fallthru
        _
    $region72: #{radiance_net_forward.1} parent=5 // pred_fallthru
      _
  $region6: #{radiance_net_forward.1} parent=0 // loop_footer
    %s21 = sadd.s32 1, %s17
  $region7: #{radiance_net_forward.1} parent=0 // loop_footer_branch
    %16 = sbr.rel target = $region3
  $region8: #{radiance_net_forward.1} parent=0 // loop_exit
    _

</llo_original>
